<compile_context>
chip_gen: v5e
topology: v5e:2x2
jax: 0.10.0
libtpu: 0.0.40
codegen_flags: <defaults>
</compile_context>

<pallas_src>
import math
import functools

import jax
import jax.numpy as jnp
from jax.experimental import pallas as pl
from jax.experimental.pallas import tpu as pltpu

NTOKEN = 2
LN_EPS = 1e-5


def _layernorm(x, g, b, inv_d):
    # f32 vector math; 1/D is a static constant multiply, rsqrt goes to the EUP.
    mu = jnp.sum(x, axis=-1, keepdims=True) * inv_d
    xc = x - mu
    var = jnp.sum(xc * xc, axis=-1, keepdims=True) * inv_d
    return xc * jax.lax.rsqrt(var + LN_EPS) * g + b


def transformer_kernel(D, H, L,
                       x_ref, pe_ref,
                       wq_ref, wk_ref, wv_ref, bq_ref, bk_ref, bv_ref,
                       wout_ref, bout_ref,
                       w1_ref, b1_ref, w2_ref, b2_ref,
                       g1_ref, be1_ref, g2_ref, be2_ref,
                       wdec_ref, bdec_ref,
                       out_ref):
    """One batch's sequence per grid step: scale + pos-enc + L post-norm encoder
    layers + relu(decoder) head.  x_ref / out_ref are [S, D]."""
    S = x_ref.shape[0]
    Dh = D // H
    inv_sqrt_dh = 1.0 / math.sqrt(Dh)
    inv_d = 1.0 / D

    # src * sqrt(d_model) + positional encoding  (dropout -> identity, eval mode)
    x = x_ref[...] * math.sqrt(D) + pe_ref[...]                      # [S, D] f32

    def split_heads(t):
        # [S, D] -> head-major [H, S, Dh] (one static relayout feeding batched MXU
        # einsums; replaces the old per-(b,h) matmul loop + concatenates).
        return jnp.stack([t[:, h * Dh:(h + 1) * Dh] for h in range(H)],
                         axis=0).astype(jnp.bfloat16)

    def layer(l, x):
        xb = x.astype(jnp.bfloat16)

        # --- self attention: separate q/k/v projections, bf16 MXU inputs ---
        q = jnp.dot(xb, wq_ref[l], preferred_element_type=jnp.float32) + bq_ref[l]
        k = jnp.dot(xb, wk_ref[l], preferred_element_type=jnp.float32) + bk_ref[l]
        v = jnp.dot(xb, wv_ref[l], preferred_element_type=jnp.float32) + bv_ref[l]
        qh, kh, vh = split_heads(q), split_heads(k), split_heads(v)   # [H, S, Dh]

        scores = jnp.einsum('hqd,hkd->hqk', qh, kh,
                            preferred_element_type=jnp.float32) * inv_sqrt_dh
        m = jnp.max(scores, axis=-1, keepdims=True)
        e = jnp.exp(scores - m)                                       # f32 EUP
        p = e * pl.reciprocal(jnp.sum(e, axis=-1, keepdims=True), approx=True)

        ctx = jnp.einsum('hqk,hkd->hqd', p.astype(jnp.bfloat16), vh,
                         preferred_element_type=jnp.float32)          # [H, S, Dh]

        # Out-projection with head-reshaped weight [H, Dh, D]; the head-sum is
        # identical to projecting the concatenated heads (no lane-dim concat).
        o = jnp.einsum('hsd,hde->hse', ctx.astype(jnp.bfloat16), wout_ref[l],
                       preferred_element_type=jnp.float32).sum(axis=0) + bout_ref[l]
        x = _layernorm(x + o, g1_ref[l], be1_ref[l], inv_d)           # post-norm

        # --- feed-forward ---
        ff = jnp.dot(x.astype(jnp.bfloat16), w1_ref[l],
                     preferred_element_type=jnp.float32) + b1_ref[l]
        ff = jnp.maximum(ff, 0.0)
        ff = jnp.dot(ff.astype(jnp.bfloat16), w2_ref[l],
                     preferred_element_type=jnp.float32) + b2_ref[l]
        return _layernorm(x + ff, g2_ref[l], be2_ref[l], inv_d)

    x = jax.lax.fori_loop(0, L, layer, x)

    # decoder head: relu(Linear(D, D)).  The D -> ntoken=2 matmul lives in the
    # XLA wrapper so the kernel's stores stay lane-dense.
    h1 = jnp.dot(x.astype(jnp.bfloat16), wdec_ref[...],
                 preferred_element_type=jnp.float32) + bdec_ref[...]
    out_ref[...] = jnp.maximum(h1, 0.0)


def positional_encoding(S, D):
    position = jnp.arange(S, dtype=jnp.float32)[:, None]
    div_term = jnp.exp(jnp.arange(0, D, 2, dtype=jnp.float32) * (-math.log(10000.0) / D))
    pe = jnp.zeros((S, D), dtype=jnp.float32)
    pe = pe.at[:, 0::2].set(jnp.sin(position * div_term))
    pe = pe.at[:, 1::2].set(jnp.cos(position * div_term))
    return pe


def init_params(key, d_model, nhead, nlayers, dim_ff, ntoken=NTOKEN):
    """Deterministic synthetic weights matching the PyTorch module's shapes,
    re-packed for the kernel (in-features first, q/k/v split, head-major out_proj,
    bf16 matmul weights, f32 biases/layernorm)."""
    dh = d_model // nhead
    ks = jax.random.split(key, 11)
    u = lambda k, shape, s=0.1: jax.random.uniform(k, shape, jnp.float32, -s, s)

    # PyTorch-layout weights: (out_features, in_features), packed in_proj.
    win = u(ks[0], (nlayers, 3 * d_model, d_model))    # MHA in_proj_weight
    b_in = u(ks[1], (nlayers, 3 * d_model))            # MHA in_proj_bias
    wout = u(ks[2], (nlayers, d_model, d_model))       # MHA out_proj.weight
    bout = u(ks[3], (nlayers, d_model))
    w1 = u(ks[4], (nlayers, dim_ff, d_model))          # linear1.weight
    b1 = u(ks[5], (nlayers, dim_ff))
    w2 = u(ks[6], (nlayers, d_model, dim_ff))          # linear2.weight
    b2 = u(ks[7], (nlayers, d_model))
    wdec = u(ks[8], (d_model, d_model))                # decoder.weight (init_weights)
    wdec2 = u(ks[9], (ntoken, d_model))                # decoder2.weight
    bdec2 = u(ks[10], (ntoken,))

    tT = lambda w: jnp.swapaxes(w, -1, -2)             # -> in-features first

    return dict(
        wq_t=tT(win[:, 0 * d_model:1 * d_model, :]).astype(jnp.bfloat16),
        wk_t=tT(win[:, 1 * d_model:2 * d_model, :]).astype(jnp.bfloat16),
        wv_t=tT(win[:, 2 * d_model:3 * d_model, :]).astype(jnp.bfloat16),
        bq=b_in[:, 0 * d_model:1 * d_model].reshape(nlayers, 1, d_model),
        bk=b_in[:, 1 * d_model:2 * d_model].reshape(nlayers, 1, d_model),
        bv=b_in[:, 2 * d_model:3 * d_model].reshape(nlayers, 1, d_model),
        # out_proj.weight.T reshaped head-major: in-feature index = h*Dh + d
        wout_h=tT(wout).reshape(nlayers, nhead, dh, d_model).astype(jnp.bfloat16),
        bout=bout.reshape(nlayers, 1, d_model),
        w1_t=tT(w1).astype(jnp.bfloat16),
        b1=b1.reshape(nlayers, 1, dim_ff),
        w2_t=tT(w2).astype(jnp.bfloat16),
        b2=b2.reshape(nlayers, 1, d_model),
        g1=jnp.ones((nlayers, 1, d_model), jnp.float32),
        be1=jnp.zeros((nlayers, 1, d_model), jnp.float32),
        g2=jnp.ones((nlayers, 1, d_model), jnp.float32),
        be2=jnp.zeros((nlayers, 1, d_model), jnp.float32),
        wdec_t=tT(wdec).astype(jnp.bfloat16),
        bdec=jnp.zeros((1, d_model), jnp.float32),       # init_weights zeroes decoder.bias
        wdec2_t=tT(wdec2),                               # applied in the wrapper (f32)
        bdec2=bdec2.reshape(1, ntoken),
    )


def transformer_forward(src, params, nhead):
    """src: [batch, d_model, seq]  ->  output [seq, batch, ntoken] (PyTorch convention)."""
    B, D, S = src.shape
    L = params["wq_t"].shape[0]

    # layout plumbing (permute(2,0,1) equivalent): batch-major [B, S, D] activations
    x0 = jnp.transpose(src, (0, 2, 1)).astype(jnp.float32)   # [B, S, D]
    pe = positional_encoding(S, D)                            # [S, D], passed once

    act_spec = pl.BlockSpec((None, S, D), lambda b: (b, 0, 0))   # one batch per step
    pe_spec = pl.BlockSpec((S, D), lambda b: (0, 0))             # resident, fetched once
    vmem = pl.BlockSpec(memory_space=pltpu.MemorySpace.VMEM)     # whole-array weights

    w_names = ["wq_t", "wk_t", "wv_t", "bq", "bk", "bv", "wout_h", "bout",
               "w1_t", "b1", "w2_t", "b2", "g1", "be1", "g2", "be2",
               "wdec_t", "bdec"]
    weights = [params[n] for n in w_names]

    h1 = pl.pallas_call(
        functools.partial(transformer_kernel, D, nhead, L),
        out_shape=jax.ShapeDtypeStruct((B, S, D), jnp.float32),
        grid=(B,),
        in_specs=[act_spec, pe_spec] + [vmem] * len(weights),
        out_specs=act_spec,
        compiler_params=pltpu.CompilerParams(
            dimension_semantics=("parallel",),            # megacore over batches
            vmem_limit_bytes=64 * 1024 * 1024),           # v7x physical VMEM budget
    )(x0, pe, *weights)

    # decoder2 (D -> ntoken=2) kept in XLA: lane-dense kernel output, the 2-wide
    # matmul is nearly free out here.
    out = jnp.einsum('bsd,dt->bst', h1, params["wdec2_t"]) + params["bdec2"]
    return jnp.transpose(out, (1, 0, 2))                  # [seq, batch, ntoken]


if __name__ == "__main__":
    batch, seq = 2, 8
    d_model, nhead, nlayers, dim_feedforward = 32, 4, 2, 64

    key = jax.random.PRNGKey(0)
    k_src, k_par = jax.random.split(key)
    src = jax.random.normal(k_src, (batch, d_model, seq), dtype=jnp.float32)
    params = init_params(k_par, d_model, nhead, nlayers, dim_feedforward)

    out = transformer_forward(src, params, nhead)
    out = jax.block_until_ready(out)
    assert out.shape == (seq, batch, NTOKEN), out.shape
    assert bool(jnp.all(jnp.isfinite(out)))
    print("KERNEL_OK")
</pallas_src>

<mosaic_0001>
module attributes {stable_mosaic.version = 11 : i64} {
  func.func @transformer_kernel(%arg0: i32, %arg1: memref<1x8x32xf32, #tpu.memory_space<vmem>>, %arg2: memref<8x32xf32, #tpu.memory_space<vmem>>, %arg3: memref<2x32x32xbf16, #tpu.memory_space<vmem>>, %arg4: memref<2x32x32xbf16, #tpu.memory_space<vmem>>, %arg5: memref<2x32x32xbf16, #tpu.memory_space<vmem>>, %arg6: memref<2x1x32xf32, #tpu.memory_space<vmem>>, %arg7: memref<2x1x32xf32, #tpu.memory_space<vmem>>, %arg8: memref<2x1x32xf32, #tpu.memory_space<vmem>>, %arg9: memref<2x4x8x32xbf16, #tpu.memory_space<vmem>>, %arg10: memref<2x1x32xf32, #tpu.memory_space<vmem>>, %arg11: memref<2x32x64xbf16, #tpu.memory_space<vmem>>, %arg12: memref<2x1x64xf32, #tpu.memory_space<vmem>>, %arg13: memref<2x64x32xbf16, #tpu.memory_space<vmem>>, %arg14: memref<2x1x32xf32, #tpu.memory_space<vmem>>, %arg15: memref<2x1x32xf32, #tpu.memory_space<vmem>>, %arg16: memref<2x1x32xf32, #tpu.memory_space<vmem>>, %arg17: memref<2x1x32xf32, #tpu.memory_space<vmem>>, %arg18: memref<2x1x32xf32, #tpu.memory_space<vmem>>, %arg19: memref<32x32xbf16, #tpu.memory_space<vmem>>, %arg20: memref<1x32xf32, #tpu.memory_space<vmem>>, %arg21: memref<1x8x32xf32, #tpu.memory_space<vmem>>) attributes {dimension_semantics = [#tpu.dimension_semantics<parallel>], iteration_bounds = array<i64: 2>, scalar_prefetch = 0 : i64, scratch_operands = 0 : i64, tpu.core_type = #tpu.core_type<tc>, window_params = [{transform_indices = @transform_0, window_bounds = array<i64: 1, 8, 32>}, {pipeline_mode = #tpu.pipeline_mode<synchronous>, transform_indices = @transform_1, window_bounds = array<i64: 8, 32>}, {pipeline_mode = #tpu.pipeline_mode<synchronous>, transform_indices = @transform_2, window_bounds = array<i64: 2, 32, 32>}, {pipeline_mode = #tpu.pipeline_mode<synchronous>, transform_indices = @transform_3, window_bounds = array<i64: 2, 32, 32>}, {pipeline_mode = #tpu.pipeline_mode<synchronous>, transform_indices = @transform_4, window_bounds = array<i64: 2, 32, 32>}, {pipeline_mode = #tpu.pipeline_mode<synchronous>, transform_indices = @transform_5, window_bounds = array<i64: 2, 1, 32>}, {pipeline_mode = #tpu.pipeline_mode<synchronous>, transform_indices = @transform_6, window_bounds = array<i64: 2, 1, 32>}, {pipeline_mode = #tpu.pipeline_mode<synchronous>, transform_indices = @transform_7, window_bounds = array<i64: 2, 1, 32>}, {pipeline_mode = #tpu.pipeline_mode<synchronous>, transform_indices = @transform_8, window_bounds = array<i64: 2, 4, 8, 32>}, {pipeline_mode = #tpu.pipeline_mode<synchronous>, transform_indices = @transform_9, window_bounds = array<i64: 2, 1, 32>}, {pipeline_mode = #tpu.pipeline_mode<synchronous>, transform_indices = @transform_10, window_bounds = array<i64: 2, 32, 64>}, {pipeline_mode = #tpu.pipeline_mode<synchronous>, transform_indices = @transform_11, window_bounds = array<i64: 2, 1, 64>}, {pipeline_mode = #tpu.pipeline_mode<synchronous>, transform_indices = @transform_12, window_bounds = array<i64: 2, 64, 32>}, {pipeline_mode = #tpu.pipeline_mode<synchronous>, transform_indices = @transform_13, window_bounds = array<i64: 2, 1, 32>}, {pipeline_mode = #tpu.pipeline_mode<synchronous>, transform_indices = @transform_14, window_bounds = array<i64: 2, 1, 32>}, {pipeline_mode = #tpu.pipeline_mode<synchronous>, transform_indices = @transform_15, window_bounds = array<i64: 2, 1, 32>}, {pipeline_mode = #tpu.pipeline_mode<synchronous>, transform_indices = @transform_16, window_bounds = array<i64: 2, 1, 32>}, {pipeline_mode = #tpu.pipeline_mode<synchronous>, transform_indices = @transform_17, window_bounds = array<i64: 2, 1, 32>}, {pipeline_mode = #tpu.pipeline_mode<synchronous>, transform_indices = @transform_18, window_bounds = array<i64: 32, 32>}, {pipeline_mode = #tpu.pipeline_mode<synchronous>, transform_indices = @transform_19, window_bounds = array<i64: 1, 32>}, {transform_indices = @transform_20, window_bounds = array<i64: 1, 8, 32>}]} {
    %c0 = arith.constant 0 : index
    %c0_0 = arith.constant 0 : index
    %c0_1 = arith.constant 0 : index
    %0 = vector.load %arg1[%c0, %c0_0, %c0_1] : memref<1x8x32xf32, #tpu.memory_space<vmem>>, vector<1x8x32xf32>
    %1 = vector.shape_cast %0 : vector<1x8x32xf32> to vector<8x32xf32>
    %cst = arith.constant 5.65685415 : f32
    %2 = vector.broadcast %cst : f32 to vector<8x32xf32>
    %3 = arith.mulf %1, %2 : vector<8x32xf32>
    %c0_2 = arith.constant 0 : index
    %c0_3 = arith.constant 0 : index
    %4 = vector.load %arg2[%c0_2, %c0_3] : memref<8x32xf32, #tpu.memory_space<vmem>>, vector<8x32xf32>
    %5 = arith.addf %3, %4 : vector<8x32xf32>
    %c0_i32 = arith.constant 0 : i32
    %c2_i32 = arith.constant 2 : i32
    %6 = arith.addi %c0_i32, %c2_i32 : i32
    %c1_i32 = arith.constant 1 : i32
    %7 = scf.for %arg22 = %c0_i32 to %6 step %c1_i32 iter_args(%arg23 = %5) -> (vector<8x32xf32>)  : i32 {
      %19 = arith.truncf %arg23 : vector<8x32xf32> to vector<8x32xbf16>
      %20 = arith.index_cast %arg22 : i32 to index
      %c0_14 = arith.constant 0 : index
      %c0_15 = arith.constant 0 : index
      %21 = vector.load %arg3[%20, %c0_14, %c0_15] : memref<2x32x32xbf16, #tpu.memory_space<vmem>>, vector<1x32x32xbf16>
      %22 = vector.shape_cast %21 : vector<1x32x32xbf16> to vector<32x32xbf16>
      %cst_16 = arith.constant dense<0.000000e+00> : vector<8x32xf32>
      %23 = tpu.matmul %19, %22, %cst_16 {dimension_numbers = #tpu.dot_dimension_numbers<[1], [0], [0], [1], [0, 0, 1, 1], [], []>} : vector<8x32xbf16>, vector<32x32xbf16>, vector<8x32xf32> -> vector<8x32xf32>
      %24 = arith.index_cast %arg22 : i32 to index
      %c0_17 = arith.constant 0 : index
      %c0_18 = arith.constant 0 : index
      %25 = vector.load %arg6[%24, %c0_17, %c0_18] : memref<2x1x32xf32, #tpu.memory_space<vmem>>, vector<1x1x32xf32>
      %26 = vector.shape_cast %25 : vector<1x1x32xf32> to vector<1x32xf32>
      %27 = vector.broadcast %26 : vector<1x32xf32> to vector<8x32xf32>
      %28 = arith.addf %23, %27 : vector<8x32xf32>
      %29 = arith.index_cast %arg22 : i32 to index
      %c0_19 = arith.constant 0 : index
      %c0_20 = arith.constant 0 : index
      %30 = vector.load %arg4[%29, %c0_19, %c0_20] : memref<2x32x32xbf16, #tpu.memory_space<vmem>>, vector<1x32x32xbf16>
      %31 = vector.shape_cast %30 : vector<1x32x32xbf16> to vector<32x32xbf16>
      %cst_21 = arith.constant dense<0.000000e+00> : vector<8x32xf32>
      %32 = tpu.matmul %19, %31, %cst_21 {dimension_numbers = #tpu.dot_dimension_numbers<[1], [0], [0], [1], [0, 0, 1, 1], [], []>} : vector<8x32xbf16>, vector<32x32xbf16>, vector<8x32xf32> -> vector<8x32xf32>
      %33 = arith.index_cast %arg22 : i32 to index
      %c0_22 = arith.constant 0 : index
      %c0_23 = arith.constant 0 : index
      %34 = vector.load %arg7[%33, %c0_22, %c0_23] : memref<2x1x32xf32, #tpu.memory_space<vmem>>, vector<1x1x32xf32>
      %35 = vector.shape_cast %34 : vector<1x1x32xf32> to vector<1x32xf32>
      %36 = vector.broadcast %35 : vector<1x32xf32> to vector<8x32xf32>
      %37 = arith.addf %32, %36 : vector<8x32xf32>
      %38 = arith.index_cast %arg22 : i32 to index
      %c0_24 = arith.constant 0 : index
      %c0_25 = arith.constant 0 : index
      %39 = vector.load %arg5[%38, %c0_24, %c0_25] : memref<2x32x32xbf16, #tpu.memory_space<vmem>>, vector<1x32x32xbf16>
      %40 = vector.shape_cast %39 : vector<1x32x32xbf16> to vector<32x32xbf16>
      %cst_26 = arith.constant dense<0.000000e+00> : vector<8x32xf32>
      %41 = tpu.matmul %19, %40, %cst_26 {dimension_numbers = #tpu.dot_dimension_numbers<[1], [0], [0], [1], [0, 0, 1, 1], [], []>} : vector<8x32xbf16>, vector<32x32xbf16>, vector<8x32xf32> -> vector<8x32xf32>
      %42 = arith.index_cast %arg22 : i32 to index
      %c0_27 = arith.constant 0 : index
      %c0_28 = arith.constant 0 : index
      %43 = vector.load %arg8[%42, %c0_27, %c0_28] : memref<2x1x32xf32, #tpu.memory_space<vmem>>, vector<1x1x32xf32>
      %44 = vector.shape_cast %43 : vector<1x1x32xf32> to vector<1x32xf32>
      %45 = vector.broadcast %44 : vector<1x32xf32> to vector<8x32xf32>
      %46 = arith.addf %41, %45 : vector<8x32xf32>
      %47 = vector.extract_strided_slice %28 {offsets = [0, 0], sizes = [8, 8], strides = [1, 1]} : vector<8x32xf32> to vector<8x8xf32>
      %48 = vector.extract_strided_slice %28 {offsets = [0, 8], sizes = [8, 8], strides = [1, 1]} : vector<8x32xf32> to vector<8x8xf32>
      %49 = vector.extract_strided_slice %28 {offsets = [0, 16], sizes = [8, 8], strides = [1, 1]} : vector<8x32xf32> to vector<8x8xf32>
      %50 = vector.extract_strided_slice %28 {offsets = [0, 24], sizes = [8, 8], strides = [1, 1]} : vector<8x32xf32> to vector<8x8xf32>
      %51 = vector.shape_cast %47 : vector<8x8xf32> to vector<1x8x8xf32>
      %52 = vector.shape_cast %48 : vector<8x8xf32> to vector<1x8x8xf32>
      %53 = vector.shape_cast %49 : vector<8x8xf32> to vector<1x8x8xf32>
      %54 = vector.shape_cast %50 : vector<8x8xf32> to vector<1x8x8xf32>
      %55 = tpu.concatenate %51, %52, %53, %54 in 0 : vector<1x8x8xf32>, vector<1x8x8xf32>, vector<1x8x8xf32>, vector<1x8x8xf32> -> vector<4x8x8xf32>
      %56 = arith.truncf %55 : vector<4x8x8xf32> to vector<4x8x8xbf16>
      %57 = vector.extract_strided_slice %37 {offsets = [0, 0], sizes = [8, 8], strides = [1, 1]} : vector<8x32xf32> to vector<8x8xf32>
      %58 = vector.extract_strided_slice %37 {offsets = [0, 8], sizes = [8, 8], strides = [1, 1]} : vector<8x32xf32> to vector<8x8xf32>
      %59 = vector.extract_strided_slice %37 {offsets = [0, 16], sizes = [8, 8], strides = [1, 1]} : vector<8x32xf32> to vector<8x8xf32>
      %60 = vector.extract_strided_slice %37 {offsets = [0, 24], sizes = [8, 8], strides = [1, 1]} : vector<8x32xf32> to vector<8x8xf32>
      %61 = vector.shape_cast %57 : vector<8x8xf32> to vector<1x8x8xf32>
      %62 = vector.shape_cast %58 : vector<8x8xf32> to vector<1x8x8xf32>
      %63 = vector.shape_cast %59 : vector<8x8xf32> to vector<1x8x8xf32>
      %64 = vector.shape_cast %60 : vector<8x8xf32> to vector<1x8x8xf32>
      %65 = tpu.concatenate %61, %62, %63, %64 in 0 : vector<1x8x8xf32>, vector<1x8x8xf32>, vector<1x8x8xf32>, vector<1x8x8xf32> -> vector<4x8x8xf32>
      %66 = arith.truncf %65 : vector<4x8x8xf32> to vector<4x8x8xbf16>
      %67 = vector.extract_strided_slice %46 {offsets = [0, 0], sizes = [8, 8], strides = [1, 1]} : vector<8x32xf32> to vector<8x8xf32>
      %68 = vector.extract_strided_slice %46 {offsets = [0, 8], sizes = [8, 8], strides = [1, 1]} : vector<8x32xf32> to vector<8x8xf32>
      %69 = vector.extract_strided_slice %46 {offsets = [0, 16], sizes = [8, 8], strides = [1, 1]} : vector<8x32xf32> to vector<8x8xf32>
      %70 = vector.extract_strided_slice %46 {offsets = [0, 24], sizes = [8, 8], strides = [1, 1]} : vector<8x32xf32> to vector<8x8xf32>
      %71 = vector.shape_cast %67 : vector<8x8xf32> to vector<1x8x8xf32>
      %72 = vector.shape_cast %68 : vector<8x8xf32> to vector<1x8x8xf32>
      %73 = vector.shape_cast %69 : vector<8x8xf32> to vector<1x8x8xf32>
      %74 = vector.shape_cast %70 : vector<8x8xf32> to vector<1x8x8xf32>
      %75 = tpu.concatenate %71, %72, %73, %74 in 0 : vector<1x8x8xf32>, vector<1x8x8xf32>, vector<1x8x8xf32>, vector<1x8x8xf32> -> vector<4x8x8xf32>
      %76 = arith.truncf %75 : vector<4x8x8xf32> to vector<4x8x8xbf16>
      "tpu.trace_start"() <{level = 10 : i32, message = "hqd,hkd->hqk"}> : () -> ()
      %cst_29 = arith.constant dense<0.000000e+00> : vector<4x8x8xf32>
      %77 = tpu.matmul %56, %66, %cst_29 {dimension_numbers = #tpu.dot_dimension_numbers<[2], [2], [1], [1], [0, 0, 0, 1, 1, 1], [0], [0]>} : vector<4x8x8xbf16>, vector<4x8x8xbf16>, vector<4x8x8xf32> -> vector<4x8x8xf32>
      "tpu.trace_stop"() : () -> ()
      %cst_30 = arith.constant 0.353553385 : f32
      %78 = vector.broadcast %cst_30 : f32 to vector<4x8x8xf32>
      %79 = arith.mulf %77, %78 : vector<4x8x8xf32>
      %cst_31 = arith.constant dense<0xFF800000> : vector<4x8xf32>
      %80 = vector.multi_reduction <maximumf>, %79, %cst_31 [2] : vector<4x8x8xf32> to vector<4x8xf32>
      %81 = vector.shape_cast %80 : vector<4x8xf32> to vector<4x8x1xf32>
      %82 = vector.broadcast %81 : vector<4x8x1xf32> to vector<4x8x8xf32>
      %83 = arith.subf %79, %82 : vector<4x8x8xf32>
      %84 = math.exp %83 : vector<4x8x8xf32>
      %cst_32 = arith.constant dense<0.000000e+00> : vector<4x8xf32>
      %85 = vector.multi_reduction <add>, %84, %cst_32 [2] : vector<4x8x8xf32> to vector<4x8xf32>
      %86 = vector.shape_cast %85 : vector<4x8xf32> to vector<4x8x1xf32>
      %87 = tpu.reciprocal %86 {approx = true} : vector<4x8x1xf32> -> vector<4x8x1xf32>
      %88 = vector.broadcast %87 : vector<4x8x1xf32> to vector<4x8x8xf32>
      %89 = arith.mulf %84, %88 : vector<4x8x8xf32>
      %90 = arith.truncf %89 : vector<4x8x8xf32> to vector<4x8x8xbf16>
      "tpu.trace_start"() <{level = 10 : i32, message = "hqk,hkd->hqd"}> : () -> ()
      %cst_33 = arith.constant dense<0.000000e+00> : vector<4x8x8xf32>
      %91 = tpu.matmul %90, %76, %cst_33 {dimension_numbers = #tpu.dot_dimension_numbers<[2], [1], [1], [2], [0, 0, 0, 1, 1, 2], [0], [0]>} : vector<4x8x8xbf16>, vector<4x8x8xbf16>, vector<4x8x8xf32> -> vector<4x8x8xf32>
      "tpu.trace_stop"() : () -> ()
      %92 = arith.truncf %91 : vector<4x8x8xf32> to vector<4x8x8xbf16>
      %93 = arith.index_cast %arg22 : i32 to index
      %c0_34 = arith.constant 0 : index
      %c0_35 = arith.constant 0 : index
      %c0_36 = arith.constant 0 : index
      %94 = vector.load %arg9[%93, %c0_34, %c0_35, %c0_36] : memref<2x4x8x32xbf16, #tpu.memory_space<vmem>>, vector<1x4x8x32xbf16>
      %95 = vector.shape_cast %94 : vector<1x4x8x32xbf16> to vector<4x8x32xbf16>
      "tpu.trace_start"() <{level = 10 : i32, message = "hsd,hde->hse"}> : () -> ()
      %cst_37 = arith.constant dense<0.000000e+00> : vector<4x8x32xf32>
      %96 = tpu.matmul %92, %95, %cst_37 {dimension_numbers = #tpu.dot_dimension_numbers<[2], [1], [1], [2], [0, 0, 0, 1, 1, 2], [0], [0]>} : vector<4x8x8xbf16>, vector<4x8x32xbf16>, vector<4x8x32xf32> -> vector<4x8x32xf32>
      "tpu.trace_stop"() : () -> ()
      %cst_38 = arith.constant dense<0.000000e+00> : vector<8x32xf32>
      %97 = vector.multi_reduction <add>, %96, %cst_38 [0] : vector<4x8x32xf32> to vector<8x32xf32>
      %98 = arith.index_cast %arg22 : i32 to index
      %c0_39 = arith.constant 0 : index
      %c0_40 = arith.constant 0 : index
      %99 = vector.load %arg10[%98, %c0_39, %c0_40] : memref<2x1x32xf32, #tpu.memory_space<vmem>>, vector<1x1x32xf32>
      %100 = vector.shape_cast %99 : vector<1x1x32xf32> to vector<1x32xf32>
      %101 = vector.broadcast %100 : vector<1x32xf32> to vector<8x32xf32>
      %102 = arith.addf %97, %101 : vector<8x32xf32>
      %103 = arith.addf %arg23, %102 : vector<8x32xf32>
      %104 = arith.index_cast %arg22 : i32 to index
      %c0_41 = arith.constant 0 : index
      %c0_42 = arith.constant 0 : index
      %105 = vector.load %arg15[%104, %c0_41, %c0_42] : memref<2x1x32xf32, #tpu.memory_space<vmem>>, vector<1x1x32xf32>
      %106 = vector.shape_cast %105 : vector<1x1x32xf32> to vector<1x32xf32>
      %107 = arith.index_cast %arg22 : i32 to index
      %c0_43 = arith.constant 0 : index
      %c0_44 = arith.constant 0 : index
      %108 = vector.load %arg16[%107, %c0_43, %c0_44] : memref<2x1x32xf32, #tpu.memory_space<vmem>>, vector<1x1x32xf32>
      %109 = vector.shape_cast %108 : vector<1x1x32xf32> to vector<1x32xf32>
      %cst_45 = arith.constant dense<0.000000e+00> : vector<8xf32>
      %110 = vector.multi_reduction <add>, %103, %cst_45 [1] : vector<8x32xf32> to vector<8xf32>
      %111 = vector.shape_cast %110 : vector<8xf32> to vector<8x1xf32>
      %cst_46 = arith.constant 3.125000e-02 : f32
      %112 = vector.broadcast %cst_46 : f32 to vector<8x1xf32>
      %113 = arith.mulf %111, %112 : vector<8x1xf32>
      %114 = vector.broadcast %113 : vector<8x1xf32> to vector<8x32xf32>
      %115 = arith.subf %103, %114 : vector<8x32xf32>
      %116 = arith.mulf %115, %115 : vector<8x32xf32>
      %cst_47 = arith.constant dense<0.000000e+00> : vector<8xf32>
      %117 = vector.multi_reduction <add>, %116, %cst_47 [1] : vector<8x32xf32> to vector<8xf32>
      %118 = vector.shape_cast %117 : vector<8xf32> to vector<8x1xf32>
      %cst_48 = arith.constant 3.125000e-02 : f32
      %119 = vector.broadcast %cst_48 : f32 to vector<8x1xf32>
      %120 = arith.mulf %118, %119 : vector<8x1xf32>
      %cst_49 = arith.constant 9.99999974E-6 : f32
      %121 = vector.broadcast %cst_49 : f32 to vector<8x1xf32>
      %122 = arith.addf %120, %121 : vector<8x1xf32>
      %123 = math.rsqrt %122 : vector<8x1xf32>
      %124 = vector.broadcast %123 : vector<8x1xf32> to vector<8x32xf32>
      %125 = arith.mulf %115, %124 : vector<8x32xf32>
      %126 = vector.broadcast %106 : vector<1x32xf32> to vector<8x32xf32>
      %127 = arith.mulf %125, %126 : vector<8x32xf32>
      %128 = vector.broadcast %109 : vector<1x32xf32> to vector<8x32xf32>
      %129 = arith.addf %127, %128 : vector<8x32xf32>
      %130 = arith.truncf %129 : vector<8x32xf32> to vector<8x32xbf16>
      %131 = arith.index_cast %arg22 : i32 to index
      %c0_50 = arith.constant 0 : index
      %c0_51 = arith.constant 0 : index
      %132 = vector.load %arg11[%131, %c0_50, %c0_51] : memref<2x32x64xbf16, #tpu.memory_space<vmem>>, vector<1x32x64xbf16>
      %133 = vector.shape_cast %132 : vector<1x32x64xbf16> to vector<32x64xbf16>
      %cst_52 = arith.constant dense<0.000000e+00> : vector<8x64xf32>
      %134 = tpu.matmul %130, %133, %cst_52 {dimension_numbers = #tpu.dot_dimension_numbers<[1], [0], [0], [1], [0, 0, 1, 1], [], []>} : vector<8x32xbf16>, vector<32x64xbf16>, vector<8x64xf32> -> vector<8x64xf32>
      %135 = arith.index_cast %arg22 : i32 to index
      %c0_53 = arith.constant 0 : index
      %c0_54 = arith.constant 0 : index
      %136 = vector.load %arg12[%135, %c0_53, %c0_54] : memref<2x1x64xf32, #tpu.memory_space<vmem>>, vector<1x1x64xf32>
      %137 = vector.shape_cast %136 : vector<1x1x64xf32> to vector<1x64xf32>
      %138 = vector.broadcast %137 : vector<1x64xf32> to vector<8x64xf32>
      %139 = arith.addf %134, %138 : vector<8x64xf32>
      %cst_55 = arith.constant 0.000000e+00 : f32
      %140 = vector.broadcast %cst_55 : f32 to vector<8x64xf32>
      %141 = arith.maximumf %139, %140 : vector<8x64xf32>
      %142 = arith.truncf %141 : vector<8x64xf32> to vector<8x64xbf16>
      %143 = arith.index_cast %arg22 : i32 to index
      %c0_56 = arith.constant 0 : index
      %c0_57 = arith.constant 0 : index
      %144 = vector.load %arg13[%143, %c0_56, %c0_57] : memref<2x64x32xbf16, #tpu.memory_space<vmem>>, vector<1x64x32xbf16>
      %145 = vector.shape_cast %144 : vector<1x64x32xbf16> to vector<64x32xbf16>
      %cst_58 = arith.constant dense<0.000000e+00> : vector<8x32xf32>
      %146 = tpu.matmul %142, %145, %cst_58 {dimension_numbers = #tpu.dot_dimension_numbers<[1], [0], [0], [1], [0, 0, 1, 1], [], []>} : vector<8x64xbf16>, vector<64x32xbf16>, vector<8x32xf32> -> vector<8x32xf32>
      %147 = arith.index_cast %arg22 : i32 to index
      %c0_59 = arith.constant 0 : index
      %c0_60 = arith.constant 0 : index
      %148 = vector.load %arg14[%147, %c0_59, %c0_60] : memref<2x1x32xf32, #tpu.memory_space<vmem>>, vector<1x1x32xf32>
      %149 = vector.shape_cast %148 : vector<1x1x32xf32> to vector<1x32xf32>
      %150 = vector.broadcast %149 : vector<1x32xf32> to vector<8x32xf32>
      %151 = arith.addf %146, %150 : vector<8x32xf32>
      %152 = arith.addf %129, %151 : vector<8x32xf32>
      %153 = arith.index_cast %arg22 : i32 to index
      %c0_61 = arith.constant 0 : index
      %c0_62 = arith.constant 0 : index
      %154 = vector.load %arg17[%153, %c0_61, %c0_62] : memref<2x1x32xf32, #tpu.memory_space<vmem>>, vector<1x1x32xf32>
      %155 = vector.shape_cast %154 : vector<1x1x32xf32> to vector<1x32xf32>
      %156 = arith.index_cast %arg22 : i32 to index
      %c0_63 = arith.constant 0 : index
      %c0_64 = arith.constant 0 : index
      %157 = vector.load %arg18[%156, %c0_63, %c0_64] : memref<2x1x32xf32, #tpu.memory_space<vmem>>, vector<1x1x32xf32>
      %158 = vector.shape_cast %157 : vector<1x1x32xf32> to vector<1x32xf32>
      %cst_65 = arith.constant dense<0.000000e+00> : vector<8xf32>
      %159 = vector.multi_reduction <add>, %152, %cst_65 [1] : vector<8x32xf32> to vector<8xf32>
      %160 = vector.shape_cast %159 : vector<8xf32> to vector<8x1xf32>
      %cst_66 = arith.constant 3.125000e-02 : f32
      %161 = vector.broadcast %cst_66 : f32 to vector<8x1xf32>
      %162 = arith.mulf %160, %161 : vector<8x1xf32>
      %163 = vector.broadcast %162 : vector<8x1xf32> to vector<8x32xf32>
      %164 = arith.subf %152, %163 : vector<8x32xf32>
      %165 = arith.mulf %164, %164 : vector<8x32xf32>
      %cst_67 = arith.constant dense<0.000000e+00> : vector<8xf32>
      %166 = vector.multi_reduction <add>, %165, %cst_67 [1] : vector<8x32xf32> to vector<8xf32>
      %167 = vector.shape_cast %166 : vector<8xf32> to vector<8x1xf32>
      %cst_68 = arith.constant 3.125000e-02 : f32
      %168 = vector.broadcast %cst_68 : f32 to vector<8x1xf32>
      %169 = arith.mulf %167, %168 : vector<8x1xf32>
      %cst_69 = arith.constant 9.99999974E-6 : f32
      %170 = vector.broadcast %cst_69 : f32 to vector<8x1xf32>
      %171 = arith.addf %169, %170 : vector<8x1xf32>
      %172 = math.rsqrt %171 : vector<8x1xf32>
      %173 = vector.broadcast %172 : vector<8x1xf32> to vector<8x32xf32>
      %174 = arith.mulf %164, %173 : vector<8x32xf32>
      %175 = vector.broadcast %155 : vector<1x32xf32> to vector<8x32xf32>
      %176 = arith.mulf %174, %175 : vector<8x32xf32>
      %177 = vector.broadcast %158 : vector<1x32xf32> to vector<8x32xf32>
      %178 = arith.addf %176, %177 : vector<8x32xf32>
      scf.yield %178 : vector<8x32xf32>
    }
    %c2_i32_4 = arith.constant 2 : i32
    %8 = arith.truncf %7 : vector<8x32xf32> to vector<8x32xbf16>
    %c0_5 = arith.constant 0 : index
    %c0_6 = arith.constant 0 : index
    %9 = vector.load %arg19[%c0_5, %c0_6] : memref<32x32xbf16, #tpu.memory_space<vmem>>, vector<32x32xbf16>
    %cst_7 = arith.constant dense<0.000000e+00> : vector<8x32xf32>
    %10 = tpu.matmul %8, %9, %cst_7 {dimension_numbers = #tpu.dot_dimension_numbers<[1], [0], [0], [1], [0, 0, 1, 1], [], []>} : vector<8x32xbf16>, vector<32x32xbf16>, vector<8x32xf32> -> vector<8x32xf32>
    %c0_8 = arith.constant 0 : index
    %c0_9 = arith.constant 0 : index
    %11 = vector.load %arg20[%c0_8, %c0_9] : memref<1x32xf32, #tpu.memory_space<vmem>>, vector<1x32xf32>
    %12 = vector.broadcast %11 : vector<1x32xf32> to vector<8x32xf32>
    %13 = arith.addf %10, %12 : vector<8x32xf32>
    %cst_10 = arith.constant 0.000000e+00 : f32
    %14 = vector.broadcast %cst_10 : f32 to vector<8x32xf32>
    %15 = arith.maximumf %13, %14 : vector<8x32xf32>
    %c0_11 = arith.constant 0 : index
    %c0_12 = arith.constant 0 : index
    %c0_13 = arith.constant 0 : index
    %16 = vector.load %arg21[%c0_11, %c0_12, %c0_13] : memref<1x8x32xf32, #tpu.memory_space<vmem>>, vector<1x8x32xf32>
    %17 = vector.shape_cast %16 : vector<1x8x32xf32> to vector<8x32xf32>
    %18 = vector.shape_cast %15 : vector<8x32xf32> to vector<1x8x32xf32>
    tpu.vector_store %arg21[%c0_11, %c0_12, %c0_13], %18 {strides = array<i32>} : memref<1x8x32xf32, #tpu.memory_space<vmem>>, vector<1x8x32xf32>,
    return
  }
  func.func @transform_0(%arg0: i32) -> (i32, i32, i32) {
    %c0_i32 = arith.constant 0 : i32
    %c0_i32_0 = arith.constant 0 : i32
    %c0_i32_1 = arith.constant 0 : i32
    return %arg0, %c0_i32, %c0_i32_0 : i32, i32, i32
  }
  func.func @transform_1(%arg0: i32) -> (i32, i32) {
    %c0_i32 = arith.constant 0 : i32
    %c0_i32_0 = arith.constant 0 : i32
    %c0_i32_1 = arith.constant 0 : i32
    return %c0_i32, %c0_i32_0 : i32, i32
  }
  func.func @transform_2(%arg0: i32) -> (i32, i32, i32) {
    %c0_i32 = arith.constant 0 : i32
    %c0_i32_0 = arith.constant 0 : i32
    %c0_i32_1 = arith.constant 0 : i32
    %c0_i32_2 = arith.constant 0 : i32
    return %c0_i32, %c0_i32_0, %c0_i32_1 : i32, i32, i32
  }
  func.func @transform_3(%arg0: i32) -> (i32, i32, i32) {
    %c0_i32 = arith.constant 0 : i32
    %c0_i32_0 = arith.constant 0 : i32
    %c0_i32_1 = arith.constant 0 : i32
    %c0_i32_2 = arith.constant 0 : i32
    return %c0_i32, %c0_i32_0, %c0_i32_1 : i32, i32, i32
  }
  func.func @transform_4(%arg0: i32) -> (i32, i32, i32) {
    %c0_i32 = arith.constant 0 : i32
    %c0_i32_0 = arith.constant 0 : i32
    %c0_i32_1 = arith.constant 0 : i32
    %c0_i32_2 = arith.constant 0 : i32
    return %c0_i32, %c0_i32_0, %c0_i32_1 : i32, i32, i32
  }
  func.func @transform_5(%arg0: i32) -> (i32, i32, i32) {
    %c0_i32 = arith.constant 0 : i32
    %c0_i32_0 = arith.constant 0 : i32
    %c0_i32_1 = arith.constant 0 : i32
    %c0_i32_2 = arith.constant 0 : i32
    return %c0_i32, %c0_i32_0, %c0_i32_1 : i32, i32, i32
  }
  func.func @transform_6(%arg0: i32) -> (i32, i32, i32) {
    %c0_i32 = arith.constant 0 : i32
    %c0_i32_0 = arith.constant 0 : i32
    %c0_i32_1 = arith.constant 0 : i32
    %c0_i32_2 = arith.constant 0 : i32
    return %c0_i32, %c0_i32_0, %c0_i32_1 : i32, i32, i32
  }
  func.func @transform_7(%arg0: i32) -> (i32, i32, i32) {
    %c0_i32 = arith.constant 0 : i32
    %c0_i32_0 = arith.constant 0 : i32
    %c0_i32_1 = arith.constant 0 : i32
    %c0_i32_2 = arith.constant 0 : i32
    return %c0_i32, %c0_i32_0, %c0_i32_1 : i32, i32, i32
  }
  func.func @transform_8(%arg0: i32) -> (i32, i32, i32, i32) {
    %c0_i32 = arith.constant 0 : i32
    %c0_i32_0 = arith.constant 0 : i32
    %c0_i32_1 = arith.constant 0 : i32
    %c0_i32_2 = arith.constant 0 : i32
    %c0_i32_3 = arith.constant 0 : i32
    return %c0_i32, %c0_i32_0, %c0_i32_1, %c0_i32_2 : i32, i32, i32, i32
  }
  func.func @transform_9(%arg0: i32) -> (i32, i32, i32) {
    %c0_i32 = arith.constant 0 : i32
    %c0_i32_0 = arith.constant 0 : i32
    %c0_i32_1 = arith.constant 0 : i32
    %c0_i32_2 = arith.constant 0 : i32
    return %c0_i32, %c0_i32_0, %c0_i32_1 : i32, i32, i32
  }
  func.func @transform_10(%arg0: i32) -> (i32, i32, i32) {
    %c0_i32 = arith.constant 0 : i32
    %c0_i32_0 = arith.constant 0 : i32
    %c0_i32_1 = arith.constant 0 : i32
    %c0_i32_2 = arith.constant 0 : i32
    return %c0_i32, %c0_i32_0, %c0_i32_1 : i32, i32, i32
  }
  func.func @transform_11(%arg0: i32) -> (i32, i32, i32) {
    %c0_i32 = arith.constant 0 : i32
    %c0_i32_0 = arith.constant 0 : i32
    %c0_i32_1 = arith.constant 0 : i32
    %c0_i32_2 = arith.constant 0 : i32
    return %c0_i32, %c0_i32_0, %c0_i32_1 : i32, i32, i32
  }
  func.func @transform_12(%arg0: i32) -> (i32, i32, i32) {
    %c0_i32 = arith.constant 0 : i32
    %c0_i32_0 = arith.constant 0 : i32
    %c0_i32_1 = arith.constant 0 : i32
    %c0_i32_2 = arith.constant 0 : i32
    return %c0_i32, %c0_i32_0, %c0_i32_1 : i32, i32, i32
  }
  func.func @transform_13(%arg0: i32) -> (i32, i32, i32) {
    %c0_i32 = arith.constant 0 : i32
    %c0_i32_0 = arith.constant 0 : i32
    %c0_i32_1 = arith.constant 0 : i32
    %c0_i32_2 = arith.constant 0 : i32
    return %c0_i32, %c0_i32_0, %c0_i32_1 : i32, i32, i32
  }
  func.func @transform_14(%arg0: i32) -> (i32, i32, i32) {
    %c0_i32 = arith.constant 0 : i32
    %c0_i32_0 = arith.constant 0 : i32
    %c0_i32_1 = arith.constant 0 : i32
    %c0_i32_2 = arith.constant 0 : i32
    return %c0_i32, %c0_i32_0, %c0_i32_1 : i32, i32, i32
  }
  func.func @transform_15(%arg0: i32) -> (i32, i32, i32) {
    %c0_i32 = arith.constant 0 : i32
    %c0_i32_0 = arith.constant 0 : i32
    %c0_i32_1 = arith.constant 0 : i32
    %c0_i32_2 = arith.constant 0 : i32
    return %c0_i32, %c0_i32_0, %c0_i32_1 : i32, i32, i32
  }
  func.func @transform_16(%arg0: i32) -> (i32, i32, i32) {
    %c0_i32 = arith.constant 0 : i32
    %c0_i32_0 = arith.constant 0 : i32
    %c0_i32_1 = arith.constant 0 : i32
    %c0_i32_2 = arith.constant 0 : i32
    return %c0_i32, %c0_i32_0, %c0_i32_1 : i32, i32, i32
  }
  func.func @transform_17(%arg0: i32) -> (i32, i32, i32) {
    %c0_i32 = arith.constant 0 : i32
    %c0_i32_0 = arith.constant 0 : i32
    %c0_i32_1 = arith.constant 0 : i32
    %c0_i32_2 = arith.constant 0 : i32
    return %c0_i32, %c0_i32_0, %c0_i32_1 : i32, i32, i32
  }
  func.func @transform_18(%arg0: i32) -> (i32, i32) {
    %c0_i32 = arith.constant 0 : i32
    %c0_i32_0 = arith.constant 0 : i32
    %c0_i32_1 = arith.constant 0 : i32
    return %c0_i32, %c0_i32_0 : i32, i32
  }
  func.func @transform_19(%arg0: i32) -> (i32, i32) {
    %c0_i32 = arith.constant 0 : i32
    %c0_i32_0 = arith.constant 0 : i32
    %c0_i32_1 = arith.constant 0 : i32
    return %c0_i32, %c0_i32_0 : i32, i32
  }
  func.func @transform_20(%arg0: i32) -> (i32, i32, i32) {
    %c0_i32 = arith.constant 0 : i32
    %c0_i32_0 = arith.constant 0 : i32
    %c0_i32_1 = arith.constant 0 : i32
    return %arg0, %c0_i32, %c0_i32_0 : i32, i32, i32
  }
}

</mosaic_0001>

<llo_original>
// kernel: tpu_custom_call.1
$region0: #{tpu_custom_call.1}
  #allocation0 [shape = 'u32[]', space=smem, size = 0x4, offset = 0x4, fixed_abs, tag = 'smem constant byte address 0x4 - core index']
  #allocation1 [shape = 'u32[72,128]{1,0:T(1,128)}', space=vmem, size = 0x9000, scoped, tag = 'internal scratch']
  %s0 = inlined_call_operand.hbm [shape: f32[2,8,32], index: 0, kind: input, shape index: {}]
  %s1 = inlined_call_operand.hbm [shape: f32[8,32], index: 1, kind: input, shape index: {}]
  %s2 = inlined_call_operand.vmem [shape: bf16[2,32,32], index: 2, kind: input, shape index: {}]
  %s3 = inlined_call_operand.vmem [shape: bf16[2,32,32], index: 3, kind: input, shape index: {}]
  %s4 = inlined_call_operand.vmem [shape: bf16[2,32,32], index: 4, kind: input, shape index: {}]
  %s5 = inlined_call_operand.hbm [shape: f32[2,1,32], index: 5, kind: input, shape index: {}]
  %s6 = inlined_call_operand.hbm [shape: f32[2,1,32], index: 6, kind: input, shape index: {}]
  %s7 = inlined_call_operand.hbm [shape: f32[2,1,32], index: 7, kind: input, shape index: {}]
  %s8 = inlined_call_operand.hbm [shape: bf16[2,4,8,32], index: 8, kind: input, shape index: {}]
  %s9 = inlined_call_operand.hbm [shape: f32[2,1,32], index: 9, kind: input, shape index: {}]
  %s10 = inlined_call_operand.hbm [shape: bf16[2,32,64], index: 10, kind: input, shape index: {}]
  %s11 = inlined_call_operand.hbm [shape: f32[2,1,64], index: 11, kind: input, shape index: {}]
  %s12 = inlined_call_operand.vmem [shape: bf16[2,64,32], index: 12, kind: input, shape index: {}]
  %s13 = inlined_call_operand.hbm [shape: f32[2,1,32], index: 13, kind: input, shape index: {}]
  %s14 = inlined_call_operand.hbm [shape: f32[2,1,32], index: 14, kind: input, shape index: {}]
  %s15 = inlined_call_operand.hbm [shape: f32[2,1,32], index: 15, kind: input, shape index: {}]
  %s16 = inlined_call_operand.hbm [shape: f32[2,1,32], index: 16, kind: input, shape index: {}]
  %s17 = inlined_call_operand.hbm [shape: f32[2,1,32], index: 17, kind: input, shape index: {}]
  %s18 = inlined_call_operand.vmem [shape: bf16[32,32], index: 18, kind: input, shape index: {}]
  %s19 = inlined_call_operand.vmem [shape: f32[1,32], index: 19, kind: input, shape index: {}]
  %s20 = inlined_call_operand.hbm [shape: f32[2,8,32], index: 20, kind: output, shape index: {}]
  %s21 = sld [smem:[#allocation0]]
  $region176: #{tpu_custom_call.1} parent=0
    _
  %s23 = ssub.s32 1, %s21
  %s24 = scalar_select 0, %s23, %s21
  $region1: #{tpu_custom_call.1} parent=0
    #allocation2 [shape = 'u8[8192]{0}', space=vmem, size = 0x2000, scoped, tag = 'input window, operand 0']
    #allocation3 [shape = 's32[2]{0}', space=sflag, size = 0x8, scoped, tag = 'scoped memory for tpu_custom_call.1']
    #allocation4 [shape = 's32[2]{0}', space=sflag, size = 0x8, scoped, tag = 'scoped memory for tpu_custom_call.1']
    #allocation5 [shape = 'u8[4096]{0}', space=vmem, size = 0x1000, scoped, tag = 'input window, operand 1, single buffered']
    #allocation6 [shape = 's32[1]{0}', space=sflag, size = 0x4, scoped, tag = 'scoped memory for tpu_custom_call.1']
    #allocation7 [shape = 'u8[1024]{0}', space=vmem, size = 0x400, scoped, tag = 'input window, operand 5, single buffered']
    #allocation8 [shape = 'u8[1024]{0}', space=vmem, size = 0x400, scoped, tag = 'input window, operand 6, single buffered']
    #allocation9 [shape = 's32[1]{0}', space=sflag, size = 0x4, scoped, tag = 'scoped memory for tpu_custom_call.1']
    #allocation10 [shape = 'u8[1024]{0}', space=vmem, size = 0x400, scoped, tag = 'input window, operand 7, single buffered']
    #allocation11 [shape = 'u8[16384]{0}', space=vmem, size = 0x4000, scoped, tag = 'input window, operand 8, single buffered']
    #allocation12 [shape = 's32[1]{0}', space=sflag, size = 0x4, scoped, tag = 'scoped memory for tpu_custom_call.1']
    #allocation13 [shape = 'u8[1024]{0}', space=vmem, size = 0x400, scoped, tag = 'input window, operand 9, single buffered']
    #allocation14 [shape = 'u8[16384]{0}', space=vmem, size = 0x4000, scoped, tag = 'input window, operand 10, single buffered']
    #allocation15 [shape = 's32[1]{0}', space=sflag, size = 0x4, scoped, tag = 'scoped memory for tpu_custom_call.1']
    #allocation16 [shape = 'u8[1024]{0}', space=vmem, size = 0x400, scoped, tag = 'input window, operand 11, single buffered']
    #allocation17 [shape = 'u8[1024]{0}', space=vmem, size = 0x400, scoped, tag = 'input window, operand 13, single buffered']
    #allocation18 [shape = 's32[1]{0}', space=sflag, size = 0x4, scoped, tag = 'scoped memory for tpu_custom_call.1']
    #allocation19 [shape = 'u8[1024]{0}', space=vmem, size = 0x400, scoped, tag = 'input window, operand 14, single buffered']
    #allocation20 [shape = 'u8[1024]{0}', space=vmem, size = 0x400, scoped, tag = 'input window, operand 15, single buffered']
    #allocation21 [shape = 's32[1]{0}', space=sflag, size = 0x4, scoped, tag = 'scoped memory for tpu_custom_call.1']
    #allocation22 [shape = 'u8[1024]{0}', space=vmem, size = 0x400, scoped, tag = 'input window, operand 16, single buffered']
    #allocation23 [shape = 'u8[1024]{0}', space=vmem, size = 0x400, scoped, tag = 'input window, operand 17, single buffered']
    #allocation24 [shape = 's32[1]{0}', space=sflag, size = 0x4, scoped, tag = 'scoped memory for tpu_custom_call.1']
    #allocation25 [shape = 'u8[8192]{0}', space=vmem, size = 0x2000, scoped, tag = 'output window, operand 0']
    %25 = vsyncpa [#allocation3], 0
    %s26 = scalar_lea.sflag [#allocation3], 1
    %27 = vsyncpa %s26, 0
    %28 = vsyncpa [#allocation6], 0
    %29 = vsyncpa [#allocation9], 0
    %30 = vsyncpa [#allocation12], 0
    %31 = vsyncpa [#allocation15], 0
    %32 = vsyncpa [#allocation18], 0
    %33 = vsyncpa [#allocation21], 0
    %34 = vsyncpa [#allocation24], 0
    %35 = vsyncpa [#allocation4], 0
    %s36 = scalar_lea.sflag [#allocation4], 1
    %37 = vsyncpa %s36, 0
    loop: start=0, step=1, limit=4
    $region2: #{tpu_custom_call.1} parent=1 // loop_pre_header
      _
    $region3: #{tpu_custom_call.1} parent=1 // loop_header
      %s39 = sphi 0, %s43
      %p40 = scmp.ge.s32.totalorder %s39, 4
      %s49 = sphi 0, %s51
      %s52 = sphi 0, %s49
      %s53 = sphi 0, %s52
      %s69 = sphi 0, %s53
      %s73 = sphi 0, %s73
      %s75 = sphi 0, %s73
      %s76 = sphi 0, %s75
      %s90 = sphi 0, %s76
      %s94 = sphi 0, %s94
      %s96 = sphi 0, %s94
      %s97 = sphi 0, %s96
      %s111 = sphi 0, %s97
      %s115 = sphi 0, %s115
      %s117 = sphi 0, %s115
      %s118 = sphi 0, %s117
      %s132 = sphi 0, %s118
      %s136 = sphi 0, %s136
      %s138 = sphi 0, %s136
      %s139 = sphi 0, %s138
      %s153 = sphi 0, %s139
      %s157 = sphi 0, %s157
      %s159 = sphi 0, %s157
      %s160 = sphi 0, %s159
      %s174 = sphi 0, %s160
      %s178 = sphi 0, %s178
      %s180 = sphi 0, %s178
      %s181 = sphi 0, %s180
      %s195 = sphi 0, %s181
      %s199 = sphi 0, %s199
      %s201 = sphi 0, %s199
      %s202 = sphi 0, %s201
      %s216 = sphi 0, %s202
      %s220 = sphi 0, %s220
      %s222 = sphi 0, %s220
      %s223 = sphi 0, %s222
      %s237 = sphi 0, %s223
      %s241 = sphi 0, %s241
      %s243 = sphi 0, %s241
      %s244 = sphi 0, %s243
      %s258 = sphi 0, %s244
      %s262 = sphi 0, %s262
      %s264 = sphi 0, %s262
      %s265 = sphi 0, %s264
      %s279 = sphi 0, %s265
      %s283 = sphi 0, %s283
      %s285 = sphi 0, %s283
      %s286 = sphi 0, %s285
      %s300 = sphi 0, %s286
      %s304 = sphi 0, %s304
      %s306 = sphi 0, %s304
      %s307 = sphi 0, %s306
      %s321 = sphi 0, %s307
      %s325 = sphi 0, %s325
      %s327 = sphi 0, %s325
      %s328 = sphi 0, %s327
      %s342 = sphi 0, %s328
      %s346 = sphi 0, %s346
      %s348 = sphi 0, %s346
      %s349 = sphi 0, %s348
      %s363 = sphi 0, %s349
      %s367 = sphi 0, %s367
      %s369 = sphi 0, %s367
      %s370 = sphi 0, %s369
      %s384 = sphi 0, %s370
      %s388 = sphi 0, %s388
      %s390 = sphi 0, %s388
      %s391 = sphi 0, %s390
      %s405 = sphi 0, %s391
      %s409 = sphi 0, %s409
      %s411 = sphi 0, %s409
      %s412 = sphi 0, %s411
      %s426 = sphi 0, %s412
      %s430 = sphi 0, %s430
      %s432 = sphi 0, %s430
      %s433 = sphi 0, %s432
      %s447 = sphi 0, %s433
      %s451 = sphi 0, %s451
      %s453 = sphi 0, %s451
      %s454 = sphi 0, %s453
      %s468 = sphi 0, %s454
      %s474 = sphi 0, %s476
      %s477 = sphi 0, %s474
      %s478 = sphi 0, %s477
      %s494 = sphi 0, %s478
    $region4: #{tpu_custom_call.1} parent=1 // loop_header_branch
      %42 = sbr.rel (%p40) target = $region8
    $region5: #{tpu_custom_call.1} parent=1 // loop_body
      %s44 = ssub.s32 %s39, 1
      %s45 = ssub.s32 %s39, 2
      %s46 = sadd.s32 %s39, 1
      %s47 = ssub.s32 %s39, %s46
      %p48 = scmp.eq.s32.totalorder %s47, 0
      %s50 = sadd.s32 %s49, 1
      %s51 = scalar_select %p48, %s49, %s50
      %p54 = pneg %p48
      %p55 = scmp.eq.s32.totalorder %s39, 1
      %p56 = por %p54, %p55
      %p57 = scmp.ne.s32.totalorder %s49, %s52
      %p58 = scmp.eq.s32.totalorder %s39, 0
      %p59 = por %p57, %p58
      %p60 = scmp.ne.s32.totalorder %s49, %s52
      %p61 = scmp.eq.s32.totalorder %s44, 1
      %p62 = por %p60, %p61
      %p63 = scmp.ne.s32.totalorder %s52, %s53
      %p64 = scmp.eq.s32.totalorder %s44, 0
      %p65 = por %p63, %p64
      %p66 = scmp.ne.s32.totalorder %s52, %s53
      %p67 = scmp.eq.s32.totalorder %s45, 1
      %p68 = por %p66, %p67
      %p70 = scmp.ne.s32.totalorder %s53, %s69
      %p71 = scmp.eq.s32.totalorder %s45, 0
      %p72 = por %p70, %p71
      %s74 = sadd.s32 %s73, 1
      %p77 = scmp.eq.s32.totalorder %s39, 1
      %p78 = scmp.ne.s32.totalorder %s73, %s75
      %p79 = scmp.eq.s32.totalorder %s39, 0
      %p80 = por %p78, %p79
      %p81 = scmp.ne.s32.totalorder %s73, %s75
      %p82 = scmp.eq.s32.totalorder %s44, 1
      %p83 = por %p81, %p82
      %p84 = scmp.ne.s32.totalorder %s75, %s76
      %p85 = scmp.eq.s32.totalorder %s44, 0
      %p86 = por %p84, %p85
      %p87 = scmp.ne.s32.totalorder %s75, %s76
      %p88 = scmp.eq.s32.totalorder %s45, 1
      %p89 = por %p87, %p88
      %p91 = scmp.ne.s32.totalorder %s76, %s90
      %p92 = scmp.eq.s32.totalorder %s45, 0
      %p93 = por %p91, %p92
      %s95 = sadd.s32 %s94, 1
      %p98 = scmp.eq.s32.totalorder %s39, 1
      %p99 = scmp.ne.s32.totalorder %s94, %s96
      %p100 = scmp.eq.s32.totalorder %s39, 0
      %p101 = por %p99, %p100
      %p102 = scmp.ne.s32.totalorder %s94, %s96
      %p103 = scmp.eq.s32.totalorder %s44, 1
      %p104 = por %p102, %p103
      %p105 = scmp.ne.s32.totalorder %s96, %s97
      %p106 = scmp.eq.s32.totalorder %s44, 0
      %p107 = por %p105, %p106
      %p108 = scmp.ne.s32.totalorder %s96, %s97
      %p109 = scmp.eq.s32.totalorder %s45, 1
      %p110 = por %p108, %p109
      %p112 = scmp.ne.s32.totalorder %s97, %s111
      %p113 = scmp.eq.s32.totalorder %s45, 0
      %p114 = por %p112, %p113
      %s116 = sadd.s32 %s115, 1
      %p119 = scmp.eq.s32.totalorder %s39, 1
      %p120 = scmp.ne.s32.totalorder %s115, %s117
      %p121 = scmp.eq.s32.totalorder %s39, 0
      %p122 = por %p120, %p121
      %p123 = scmp.ne.s32.totalorder %s115, %s117
      %p124 = scmp.eq.s32.totalorder %s44, 1
      %p125 = por %p123, %p124
      %p126 = scmp.ne.s32.totalorder %s117, %s118
      %p127 = scmp.eq.s32.totalorder %s44, 0
      %p128 = por %p126, %p127
      %p129 = scmp.ne.s32.totalorder %s117, %s118
      %p130 = scmp.eq.s32.totalorder %s45, 1
      %p131 = por %p129, %p130
      %p133 = scmp.ne.s32.totalorder %s118, %s132
      %p134 = scmp.eq.s32.totalorder %s45, 0
      %p135 = por %p133, %p134
      %s137 = sadd.s32 %s136, 1
      %p140 = scmp.eq.s32.totalorder %s39, 1
      %p141 = scmp.ne.s32.totalorder %s136, %s138
      %p142 = scmp.eq.s32.totalorder %s39, 0
      %p143 = por %p141, %p142
      %p144 = scmp.ne.s32.totalorder %s136, %s138
      %p145 = scmp.eq.s32.totalorder %s44, 1
      %p146 = por %p144, %p145
      %p147 = scmp.ne.s32.totalorder %s138, %s139
      %p148 = scmp.eq.s32.totalorder %s44, 0
      %p149 = por %p147, %p148
      %p150 = scmp.ne.s32.totalorder %s138, %s139
      %p151 = scmp.eq.s32.totalorder %s45, 1
      %p152 = por %p150, %p151
      %p154 = scmp.ne.s32.totalorder %s139, %s153
      %p155 = scmp.eq.s32.totalorder %s45, 0
      %p156 = por %p154, %p155
      %s158 = sadd.s32 %s157, 1
      %p161 = scmp.eq.s32.totalorder %s39, 1
      %p162 = scmp.ne.s32.totalorder %s157, %s159
      %p163 = scmp.eq.s32.totalorder %s39, 0
      %p164 = por %p162, %p163
      %p165 = scmp.ne.s32.totalorder %s157, %s159
      %p166 = scmp.eq.s32.totalorder %s44, 1
      %p167 = por %p165, %p166
      %p168 = scmp.ne.s32.totalorder %s159, %s160
      %p169 = scmp.eq.s32.totalorder %s44, 0
      %p170 = por %p168, %p169
      %p171 = scmp.ne.s32.totalorder %s159, %s160
      %p172 = scmp.eq.s32.totalorder %s45, 1
      %p173 = por %p171, %p172
      %p175 = scmp.ne.s32.totalorder %s160, %s174
      %p176 = scmp.eq.s32.totalorder %s45, 0
      %p177 = por %p175, %p176
      %s179 = sadd.s32 %s178, 1
      %p182 = scmp.eq.s32.totalorder %s39, 1
      %p183 = scmp.ne.s32.totalorder %s178, %s180
      %p184 = scmp.eq.s32.totalorder %s39, 0
      %p185 = por %p183, %p184
      %p186 = scmp.ne.s32.totalorder %s178, %s180
      %p187 = scmp.eq.s32.totalorder %s44, 1
      %p188 = por %p186, %p187
      %p189 = scmp.ne.s32.totalorder %s180, %s181
      %p190 = scmp.eq.s32.totalorder %s44, 0
      %p191 = por %p189, %p190
      %p192 = scmp.ne.s32.totalorder %s180, %s181
      %p193 = scmp.eq.s32.totalorder %s45, 1
      %p194 = por %p192, %p193
      %p196 = scmp.ne.s32.totalorder %s181, %s195
      %p197 = scmp.eq.s32.totalorder %s45, 0
      %p198 = por %p196, %p197
      %s200 = sadd.s32 %s199, 1
      %p203 = scmp.eq.s32.totalorder %s39, 1
      %p204 = scmp.ne.s32.totalorder %s199, %s201
      %p205 = scmp.eq.s32.totalorder %s39, 0
      %p206 = por %p204, %p205
      %p207 = scmp.ne.s32.totalorder %s199, %s201
      %p208 = scmp.eq.s32.totalorder %s44, 1
      %p209 = por %p207, %p208
      %p210 = scmp.ne.s32.totalorder %s201, %s202
      %p211 = scmp.eq.s32.totalorder %s44, 0
      %p212 = por %p210, %p211
      %p213 = scmp.ne.s32.totalorder %s201, %s202
      %p214 = scmp.eq.s32.totalorder %s45, 1
      %p215 = por %p213, %p214
      %p217 = scmp.ne.s32.totalorder %s202, %s216
      %p218 = scmp.eq.s32.totalorder %s45, 0
      %p219 = por %p217, %p218
      %s221 = sadd.s32 %s220, 1
      %p224 = scmp.eq.s32.totalorder %s39, 1
      %p225 = scmp.ne.s32.totalorder %s220, %s222
      %p226 = scmp.eq.s32.totalorder %s39, 0
      %p227 = por %p225, %p226
      %p228 = scmp.ne.s32.totalorder %s220, %s222
      %p229 = scmp.eq.s32.totalorder %s44, 1
      %p230 = por %p228, %p229
      %p231 = scmp.ne.s32.totalorder %s222, %s223
      %p232 = scmp.eq.s32.totalorder %s44, 0
      %p233 = por %p231, %p232
      %p234 = scmp.ne.s32.totalorder %s222, %s223
      %p235 = scmp.eq.s32.totalorder %s45, 1
      %p236 = por %p234, %p235
      %p238 = scmp.ne.s32.totalorder %s223, %s237
      %p239 = scmp.eq.s32.totalorder %s45, 0
      %p240 = por %p238, %p239
      %s242 = sadd.s32 %s241, 1
      %p245 = scmp.eq.s32.totalorder %s39, 1
      %p246 = scmp.ne.s32.totalorder %s241, %s243
      %p247 = scmp.eq.s32.totalorder %s39, 0
      %p248 = por %p246, %p247
      %p249 = scmp.ne.s32.totalorder %s241, %s243
      %p250 = scmp.eq.s32.totalorder %s44, 1
      %p251 = por %p249, %p250
      %p252 = scmp.ne.s32.totalorder %s243, %s244
      %p253 = scmp.eq.s32.totalorder %s44, 0
      %p254 = por %p252, %p253
      %p255 = scmp.ne.s32.totalorder %s243, %s244
      %p256 = scmp.eq.s32.totalorder %s45, 1
      %p257 = por %p255, %p256
      %p259 = scmp.ne.s32.totalorder %s244, %s258
      %p260 = scmp.eq.s32.totalorder %s45, 0
      %p261 = por %p259, %p260
      %s263 = sadd.s32 %s262, 1
      %p266 = scmp.eq.s32.totalorder %s39, 1
      %p267 = scmp.ne.s32.totalorder %s262, %s264
      %p268 = scmp.eq.s32.totalorder %s39, 0
      %p269 = por %p267, %p268
      %p270 = scmp.ne.s32.totalorder %s262, %s264
      %p271 = scmp.eq.s32.totalorder %s44, 1
      %p272 = por %p270, %p271
      %p273 = scmp.ne.s32.totalorder %s264, %s265
      %p274 = scmp.eq.s32.totalorder %s44, 0
      %p275 = por %p273, %p274
      %p276 = scmp.ne.s32.totalorder %s264, %s265
      %p277 = scmp.eq.s32.totalorder %s45, 1
      %p278 = por %p276, %p277
      %p280 = scmp.ne.s32.totalorder %s265, %s279
      %p281 = scmp.eq.s32.totalorder %s45, 0
      %p282 = por %p280, %p281
      %s284 = sadd.s32 %s283, 1
      %p287 = scmp.eq.s32.totalorder %s39, 1
      %p288 = scmp.ne.s32.totalorder %s283, %s285
      %p289 = scmp.eq.s32.totalorder %s39, 0
      %p290 = por %p288, %p289
      %p291 = scmp.ne.s32.totalorder %s283, %s285
      %p292 = scmp.eq.s32.totalorder %s44, 1
      %p293 = por %p291, %p292
      %p294 = scmp.ne.s32.totalorder %s285, %s286
      %p295 = scmp.eq.s32.totalorder %s44, 0
      %p296 = por %p294, %p295
      %p297 = scmp.ne.s32.totalorder %s285, %s286
      %p298 = scmp.eq.s32.totalorder %s45, 1
      %p299 = por %p297, %p298
      %p301 = scmp.ne.s32.totalorder %s286, %s300
      %p302 = scmp.eq.s32.totalorder %s45, 0
      %p303 = por %p301, %p302
      %s305 = sadd.s32 %s304, 1
      %p308 = scmp.eq.s32.totalorder %s39, 1
      %p309 = scmp.ne.s32.totalorder %s304, %s306
      %p310 = scmp.eq.s32.totalorder %s39, 0
      %p311 = por %p309, %p310
      %p312 = scmp.ne.s32.totalorder %s304, %s306
      %p313 = scmp.eq.s32.totalorder %s44, 1
      %p314 = por %p312, %p313
      %p315 = scmp.ne.s32.totalorder %s306, %s307
      %p316 = scmp.eq.s32.totalorder %s44, 0
      %p317 = por %p315, %p316
      %p318 = scmp.ne.s32.totalorder %s306, %s307
      %p319 = scmp.eq.s32.totalorder %s45, 1
      %p320 = por %p318, %p319
      %p322 = scmp.ne.s32.totalorder %s307, %s321
      %p323 = scmp.eq.s32.totalorder %s45, 0
      %p324 = por %p322, %p323
      %s326 = sadd.s32 %s325, 1
      %p329 = scmp.eq.s32.totalorder %s39, 1
      %p330 = scmp.ne.s32.totalorder %s325, %s327
      %p331 = scmp.eq.s32.totalorder %s39, 0
      %p332 = por %p330, %p331
      %p333 = scmp.ne.s32.totalorder %s325, %s327
      %p334 = scmp.eq.s32.totalorder %s44, 1
      %p335 = por %p333, %p334
      %p336 = scmp.ne.s32.totalorder %s327, %s328
      %p337 = scmp.eq.s32.totalorder %s44, 0
      %p338 = por %p336, %p337
      %p339 = scmp.ne.s32.totalorder %s327, %s328
      %p340 = scmp.eq.s32.totalorder %s45, 1
      %p341 = por %p339, %p340
      %p343 = scmp.ne.s32.totalorder %s328, %s342
      %p344 = scmp.eq.s32.totalorder %s45, 0
      %p345 = por %p343, %p344
      %s347 = sadd.s32 %s346, 1
      %p350 = scmp.eq.s32.totalorder %s39, 1
      %p351 = scmp.ne.s32.totalorder %s346, %s348
      %p352 = scmp.eq.s32.totalorder %s39, 0
      %p353 = por %p351, %p352
      %p354 = scmp.ne.s32.totalorder %s346, %s348
      %p355 = scmp.eq.s32.totalorder %s44, 1
      %p356 = por %p354, %p355
      %p357 = scmp.ne.s32.totalorder %s348, %s349
      %p358 = scmp.eq.s32.totalorder %s44, 0
      %p359 = por %p357, %p358
      %p360 = scmp.ne.s32.totalorder %s348, %s349
      %p361 = scmp.eq.s32.totalorder %s45, 1
      %p362 = por %p360, %p361
      %p364 = scmp.ne.s32.totalorder %s349, %s363
      %p365 = scmp.eq.s32.totalorder %s45, 0
      %p366 = por %p364, %p365
      %s368 = sadd.s32 %s367, 1
      %p371 = scmp.eq.s32.totalorder %s39, 1
      %p372 = scmp.ne.s32.totalorder %s367, %s369
      %p373 = scmp.eq.s32.totalorder %s39, 0
      %p374 = por %p372, %p373
      %p375 = scmp.ne.s32.totalorder %s367, %s369
      %p376 = scmp.eq.s32.totalorder %s44, 1
      %p377 = por %p375, %p376
      %p378 = scmp.ne.s32.totalorder %s369, %s370
      %p379 = scmp.eq.s32.totalorder %s44, 0
      %p380 = por %p378, %p379
      %p381 = scmp.ne.s32.totalorder %s369, %s370
      %p382 = scmp.eq.s32.totalorder %s45, 1
      %p383 = por %p381, %p382
      %p385 = scmp.ne.s32.totalorder %s370, %s384
      %p386 = scmp.eq.s32.totalorder %s45, 0
      %p387 = por %p385, %p386
      %s389 = sadd.s32 %s388, 1
      %p392 = scmp.eq.s32.totalorder %s39, 1
      %p393 = scmp.ne.s32.totalorder %s388, %s390
      %p394 = scmp.eq.s32.totalorder %s39, 0
      %p395 = por %p393, %p394
      %p396 = scmp.ne.s32.totalorder %s388, %s390
      %p397 = scmp.eq.s32.totalorder %s44, 1
      %p398 = por %p396, %p397
      %p399 = scmp.ne.s32.totalorder %s390, %s391
      %p400 = scmp.eq.s32.totalorder %s44, 0
      %p401 = por %p399, %p400
      %p402 = scmp.ne.s32.totalorder %s390, %s391
      %p403 = scmp.eq.s32.totalorder %s45, 1
      %p404 = por %p402, %p403
      %p406 = scmp.ne.s32.totalorder %s391, %s405
      %p407 = scmp.eq.s32.totalorder %s45, 0
      %p408 = por %p406, %p407
      %s410 = sadd.s32 %s409, 1
      %p413 = scmp.eq.s32.totalorder %s39, 1
      %p414 = scmp.ne.s32.totalorder %s409, %s411
      %p415 = scmp.eq.s32.totalorder %s39, 0
      %p416 = por %p414, %p415
      %p417 = scmp.ne.s32.totalorder %s409, %s411
      %p418 = scmp.eq.s32.totalorder %s44, 1
      %p419 = por %p417, %p418
      %p420 = scmp.ne.s32.totalorder %s411, %s412
      %p421 = scmp.eq.s32.totalorder %s44, 0
      %p422 = por %p420, %p421
      %p423 = scmp.ne.s32.totalorder %s411, %s412
      %p424 = scmp.eq.s32.totalorder %s45, 1
      %p425 = por %p423, %p424
      %p427 = scmp.ne.s32.totalorder %s412, %s426
      %p428 = scmp.eq.s32.totalorder %s45, 0
      %p429 = por %p427, %p428
      %s431 = sadd.s32 %s430, 1
      %p434 = scmp.eq.s32.totalorder %s39, 1
      %p435 = scmp.ne.s32.totalorder %s430, %s432
      %p436 = scmp.eq.s32.totalorder %s39, 0
      %p437 = por %p435, %p436
      %p438 = scmp.ne.s32.totalorder %s430, %s432
      %p439 = scmp.eq.s32.totalorder %s44, 1
      %p440 = por %p438, %p439
      %p441 = scmp.ne.s32.totalorder %s432, %s433
      %p442 = scmp.eq.s32.totalorder %s44, 0
      %p443 = por %p441, %p442
      %p444 = scmp.ne.s32.totalorder %s432, %s433
      %p445 = scmp.eq.s32.totalorder %s45, 1
      %p446 = por %p444, %p445
      %p448 = scmp.ne.s32.totalorder %s433, %s447
      %p449 = scmp.eq.s32.totalorder %s45, 0
      %p450 = por %p448, %p449
      %s452 = sadd.s32 %s451, 1
      %p455 = scmp.eq.s32.totalorder %s39, 1
      %p456 = scmp.ne.s32.totalorder %s451, %s453
      %p457 = scmp.eq.s32.totalorder %s39, 0
      %p458 = por %p456, %p457
      %p459 = scmp.ne.s32.totalorder %s451, %s453
      %p460 = scmp.eq.s32.totalorder %s44, 1
      %p461 = por %p459, %p460
      %p462 = scmp.ne.s32.totalorder %s453, %s454
      %p463 = scmp.eq.s32.totalorder %s44, 0
      %p464 = por %p462, %p463
      %p465 = scmp.ne.s32.totalorder %s453, %s454
      %p466 = scmp.eq.s32.totalorder %s45, 1
      %p467 = por %p465, %p466
      %p469 = scmp.ne.s32.totalorder %s454, %s468
      %p470 = scmp.eq.s32.totalorder %s45, 0
      %p471 = por %p469, %p470
      %s472 = ssub.s32 %s39, %s46
      %p473 = scmp.eq.s32.totalorder %s472, 0
      %s475 = sadd.s32 %s474, 1
      %s476 = scalar_select %p473, %s474, %s475
      %p479 = pneg %p473
      %p480 = scmp.eq.s32.totalorder %s39, 1
      %p481 = por %p479, %p480
      %p482 = scmp.ne.s32.totalorder %s474, %s477
      %p483 = scmp.eq.s32.totalorder %s39, 0
      %p484 = por %p482, %p483
      %p485 = scmp.ne.s32.totalorder %s474, %s477
      %p486 = scmp.eq.s32.totalorder %s44, 1
      %p487 = por %p485, %p486
      %p488 = scmp.ne.s32.totalorder %s477, %s478
      %p489 = scmp.eq.s32.totalorder %s44, 0
      %p490 = por %p488, %p489
      %p491 = scmp.ne.s32.totalorder %s477, %s478
      %p492 = scmp.eq.s32.totalorder %s45, 1
      %p493 = por %p491, %p492
      %p495 = scmp.ne.s32.totalorder %s478, %s494
      %p496 = scmp.eq.s32.totalorder %s45, 0
      %p497 = por %p495, %p496
      %p498 = scmp.le.s32.totalorder 1, %s39
      %p499 = scmp.lt.s32.totalorder %s39, 3
      %p500 = pnand %p498, %p499
      %p501 = pneg %p500
      // Predicated region
      $region9: #{tpu_custom_call.1} parent=5 // pred_check
        _
      $region10: #{tpu_custom_call.1} parent=5 // pred_check_branch
        %503 = sbr.rel (%p500) target = $region12
      $region11: #{tpu_custom_call.1} parent=5 // pred_region
        %s504 = ssub.s32 %s39, 1
        // Predicated region
        $region13: #{tpu_custom_call.1} parent=11 // pred_check
          %p505 = pneg %p86
        $region14: #{tpu_custom_call.1} parent=11 // pred_check_branch
          %507 = sbr.rel (%p505) target = $region16
        $region15: #{tpu_custom_call.1} parent=11 // pred_region
          %509 = vsyncadd [#allocation6], 0
          %s511 = sshll.u32 %s1, 4
          %s512 = int_to_ptr.hbm [resolvable:$true] %s511
          %s513 = sshll.u32 [#allocation5], 4
          %s514 = int_to_ptr.vmem [resolvable:$true] %s513
          %516 = dma.hbm_to_vmem [thread:$0]  %s512, 128, %s514, [#allocation6]
        $region16: #{tpu_custom_call.1} parent=11 // pred_fallthru
          _
        // Predicated region
        $region17: #{tpu_custom_call.1} parent=11 // pred_check
          %p517 = pneg %p107
        $region18: #{tpu_custom_call.1} parent=11 // pred_check_branch
          %519 = sbr.rel (%p517) target = $region20
        $region19: #{tpu_custom_call.1} parent=11 // pred_region
          _
        $region20: #{tpu_custom_call.1} parent=11 // pred_fallthru
          _
        // Predicated region
        $region21: #{tpu_custom_call.1} parent=11 // pred_check
          %p520 = pneg %p128
        $region22: #{tpu_custom_call.1} parent=11 // pred_check_branch
          %522 = sbr.rel (%p520) target = $region24
        $region23: #{tpu_custom_call.1} parent=11 // pred_region
          _
        $region24: #{tpu_custom_call.1} parent=11 // pred_fallthru
          _
        // Predicated region
        $region25: #{tpu_custom_call.1} parent=11 // pred_check
          %p523 = pneg %p149
        $region26: #{tpu_custom_call.1} parent=11 // pred_check_branch
          %525 = sbr.rel (%p523) target = $region28
        $region27: #{tpu_custom_call.1} parent=11 // pred_region
          _
        $region28: #{tpu_custom_call.1} parent=11 // pred_fallthru
          _
        // Predicated region
        $region29: #{tpu_custom_call.1} parent=11 // pred_check
          %p526 = pneg %p170
        $region30: #{tpu_custom_call.1} parent=11 // pred_check_branch
          %528 = sbr.rel (%p526) target = $region32
        $region31: #{tpu_custom_call.1} parent=11 // pred_region
          %530 = vsyncadd [#allocation6], 0
          %s531 = sshll.u32 %s5, 4
          %s532 = int_to_ptr.hbm [resolvable:$true] %s531
          %s533 = sshll.u32 [#allocation7], 4
          %s534 = int_to_ptr.vmem [resolvable:$true] %s533
          %539 = dma.hbm_to_vmem [thread:$0]  %s532, 32, %s534, [#allocation6], 16, 16, 1
        $region32: #{tpu_custom_call.1} parent=11 // pred_fallthru
          _
        // Predicated region
        $region33: #{tpu_custom_call.1} parent=11 // pred_check
          %p540 = pneg %p191
        $region34: #{tpu_custom_call.1} parent=11 // pred_check_branch
          %542 = sbr.rel (%p540) target = $region36
        $region35: #{tpu_custom_call.1} parent=11 // pred_region
          %544 = vsyncadd [#allocation9], 0
          %s545 = sshll.u32 %s6, 4
          %s546 = int_to_ptr.hbm [resolvable:$true] %s545
          %s547 = sshll.u32 [#allocation8], 4
          %s548 = int_to_ptr.vmem [resolvable:$true] %s547
          %553 = dma.hbm_to_vmem [thread:$0]  %s546, 32, %s548, [#allocation9], 16, 16, 1
        $region36: #{tpu_custom_call.1} parent=11 // pred_fallthru
          _
        // Predicated region
        $region37: #{tpu_custom_call.1} parent=11 // pred_check
          %p554 = pneg %p212
        $region38: #{tpu_custom_call.1} parent=11 // pred_check_branch
          %556 = sbr.rel (%p554) target = $region40
        $region39: #{tpu_custom_call.1} parent=11 // pred_region
          %558 = vsyncadd [#allocation9], 0
          %s559 = sshll.u32 %s7, 4
          %s560 = int_to_ptr.hbm [resolvable:$true] %s559
          %s561 = sshll.u32 [#allocation10], 4
          %s562 = int_to_ptr.vmem [resolvable:$true] %s561
          %567 = dma.hbm_to_vmem [thread:$0]  %s560, 32, %s562, [#allocation9], 16, 16, 1
        $region40: #{tpu_custom_call.1} parent=11 // pred_fallthru
          _
        // Predicated region
        $region41: #{tpu_custom_call.1} parent=11 // pred_check
          %p568 = pneg %p233
        $region42: #{tpu_custom_call.1} parent=11 // pred_check_branch
          %570 = sbr.rel (%p568) target = $region44
        $region43: #{tpu_custom_call.1} parent=11 // pred_region
          %572 = vsyncadd [#allocation12], 0
          %s573 = sshll.u32 %s8, 4
          %s574 = int_to_ptr.hbm [resolvable:$true] %s573
          %s575 = sshll.u32 [#allocation11], 4
          %s576 = int_to_ptr.vmem [resolvable:$true] %s575
          %581 = dma.hbm_to_vmem [thread:$0]  %s574, 512, %s576, [#allocation12], 64, 64, 4
        $region44: #{tpu_custom_call.1} parent=11 // pred_fallthru
          _
        // Predicated region
        $region45: #{tpu_custom_call.1} parent=11 // pred_check
          %p582 = pneg %p254
        $region46: #{tpu_custom_call.1} parent=11 // pred_check_branch
          %584 = sbr.rel (%p582) target = $region48
        $region47: #{tpu_custom_call.1} parent=11 // pred_region
          %586 = vsyncadd [#allocation12], 0
          %s587 = sshll.u32 %s9, 4
          %s588 = int_to_ptr.hbm [resolvable:$true] %s587
          %s589 = sshll.u32 [#allocation13], 4
          %s590 = int_to_ptr.vmem [resolvable:$true] %s589
          %595 = dma.hbm_to_vmem [thread:$0]  %s588, 32, %s590, [#allocation12], 16, 16, 1
        $region48: #{tpu_custom_call.1} parent=11 // pred_fallthru
          _
        // Predicated region
        $region49: #{tpu_custom_call.1} parent=11 // pred_check
          %p596 = pneg %p275
        $region50: #{tpu_custom_call.1} parent=11 // pred_check_branch
          %598 = sbr.rel (%p596) target = $region52
        $region51: #{tpu_custom_call.1} parent=11 // pred_region
          %600 = vsyncadd [#allocation15], 0
          %s601 = sshll.u32 %s10, 4
          %s602 = int_to_ptr.hbm [resolvable:$true] %s601
          %s603 = sshll.u32 [#allocation14], 4
          %s604 = int_to_ptr.vmem [resolvable:$true] %s603
          %609 = dma.hbm_to_vmem [thread:$0]  %s602, 512, %s604, [#allocation15], 64, 64, 4
        $region52: #{tpu_custom_call.1} parent=11 // pred_fallthru
          _
        // Predicated region
        $region53: #{tpu_custom_call.1} parent=11 // pred_check
          %p610 = pneg %p296
        $region54: #{tpu_custom_call.1} parent=11 // pred_check_branch
          %612 = sbr.rel (%p610) target = $region56
        $region55: #{tpu_custom_call.1} parent=11 // pred_region
          %614 = vsyncadd [#allocation15], 0
          %s615 = sshll.u32 %s11, 4
          %s616 = int_to_ptr.hbm [resolvable:$true] %s615
          %s617 = sshll.u32 [#allocation16], 4
          %s618 = int_to_ptr.vmem [resolvable:$true] %s617
          %623 = dma.hbm_to_vmem [thread:$0]  %s616, 32, %s618, [#allocation15], 16, 16, 1
        $region56: #{tpu_custom_call.1} parent=11 // pred_fallthru
          _
        // Predicated region
        $region57: #{tpu_custom_call.1} parent=11 // pred_check
          %p624 = pneg %p317
        $region58: #{tpu_custom_call.1} parent=11 // pred_check_branch
          %626 = sbr.rel (%p624) target = $region60
        $region59: #{tpu_custom_call.1} parent=11 // pred_region
          _
        $region60: #{tpu_custom_call.1} parent=11 // pred_fallthru
          _
        // Predicated region
        $region61: #{tpu_custom_call.1} parent=11 // pred_check
          %p627 = pneg %p338
        $region62: #{tpu_custom_call.1} parent=11 // pred_check_branch
          %629 = sbr.rel (%p627) target = $region64
        $region63: #{tpu_custom_call.1} parent=11 // pred_region
          %631 = vsyncadd [#allocation18], 0
          %s632 = sshll.u32 %s13, 4
          %s633 = int_to_ptr.hbm [resolvable:$true] %s632
          %s634 = sshll.u32 [#allocation17], 4
          %s635 = int_to_ptr.vmem [resolvable:$true] %s634
          %640 = dma.hbm_to_vmem [thread:$0]  %s633, 32, %s635, [#allocation18], 16, 16, 1
        $region64: #{tpu_custom_call.1} parent=11 // pred_fallthru
          _
        // Predicated region
        $region65: #{tpu_custom_call.1} parent=11 // pred_check
          %p641 = pneg %p359
        $region66: #{tpu_custom_call.1} parent=11 // pred_check_branch
          %643 = sbr.rel (%p641) target = $region68
        $region67: #{tpu_custom_call.1} parent=11 // pred_region
          %645 = vsyncadd [#allocation18], 0
          %s646 = sshll.u32 %s14, 4
          %s647 = int_to_ptr.hbm [resolvable:$true] %s646
          %s648 = sshll.u32 [#allocation19], 4
          %s649 = int_to_ptr.vmem [resolvable:$true] %s648
          %654 = dma.hbm_to_vmem [thread:$0]  %s647, 32, %s649, [#allocation18], 16, 16, 1
        $region68: #{tpu_custom_call.1} parent=11 // pred_fallthru
          _
        // Predicated region
        $region69: #{tpu_custom_call.1} parent=11 // pred_check
          %p655 = pneg %p380
        $region70: #{tpu_custom_call.1} parent=11 // pred_check_branch
          %657 = sbr.rel (%p655) target = $region72
        $region71: #{tpu_custom_call.1} parent=11 // pred_region
          %659 = vsyncadd [#allocation21], 0
          %s660 = sshll.u32 %s15, 4
          %s661 = int_to_ptr.hbm [resolvable:$true] %s660
          %s662 = sshll.u32 [#allocation20], 4
          %s663 = int_to_ptr.vmem [resolvable:$true] %s662
          %668 = dma.hbm_to_vmem [thread:$0]  %s661, 32, %s663, [#allocation21], 16, 16, 1
        $region72: #{tpu_custom_call.1} parent=11 // pred_fallthru
          _
        // Predicated region
        $region73: #{tpu_custom_call.1} parent=11 // pred_check
          %p669 = pneg %p401
        $region74: #{tpu_custom_call.1} parent=11 // pred_check_branch
          %671 = sbr.rel (%p669) target = $region76
        $region75: #{tpu_custom_call.1} parent=11 // pred_region
          %673 = vsyncadd [#allocation21], 0
          %s674 = sshll.u32 %s16, 4
          %s675 = int_to_ptr.hbm [resolvable:$true] %s674
          %s676 = sshll.u32 [#allocation22], 4
          %s677 = int_to_ptr.vmem [resolvable:$true] %s676
          %682 = dma.hbm_to_vmem [thread:$0]  %s675, 32, %s677, [#allocation21], 16, 16, 1
        $region76: #{tpu_custom_call.1} parent=11 // pred_fallthru
          _
        // Predicated region
        $region77: #{tpu_custom_call.1} parent=11 // pred_check
          %p683 = pneg %p422
        $region78: #{tpu_custom_call.1} parent=11 // pred_check_branch
          %685 = sbr.rel (%p683) target = $region80
        $region79: #{tpu_custom_call.1} parent=11 // pred_region
          %687 = vsyncadd [#allocation24], 0
          %s688 = sshll.u32 %s17, 4
          %s689 = int_to_ptr.hbm [resolvable:$true] %s688
          %s690 = sshll.u32 [#allocation23], 4
          %s691 = int_to_ptr.vmem [resolvable:$true] %s690
          %696 = dma.hbm_to_vmem [thread:$0]  %s689, 32, %s691, [#allocation24], 16, 16, 1
        $region80: #{tpu_custom_call.1} parent=11 // pred_fallthru
          _
        // Predicated region
        $region81: #{tpu_custom_call.1} parent=11 // pred_check
          %p697 = pneg %p443
        $region82: #{tpu_custom_call.1} parent=11 // pred_check_branch
          %699 = sbr.rel (%p697) target = $region84
        $region83: #{tpu_custom_call.1} parent=11 // pred_region
          _
        $region84: #{tpu_custom_call.1} parent=11 // pred_fallthru
          _
        // Predicated region
        $region85: #{tpu_custom_call.1} parent=11 // pred_check
          %p700 = pneg %p464
        $region86: #{tpu_custom_call.1} parent=11 // pred_check_branch
          %702 = sbr.rel (%p700) target = $region88
        $region87: #{tpu_custom_call.1} parent=11 // pred_region
          _
        $region88: #{tpu_custom_call.1} parent=11 // pred_fallthru
          _
      $region12: #{tpu_custom_call.1} parent=5 // pred_fallthru
        _
      %p703 = scmp.lt.s32.totalorder %s39, 2
      // Predicated region
      $region89: #{tpu_custom_call.1} parent=5 // pred_check
        %p704 = pneg %p703
      $region90: #{tpu_custom_call.1} parent=5 // pred_check_branch
        %706 = sbr.rel (%p704) target = $region92
      $region91: #{tpu_custom_call.1} parent=5 // pred_region
        // Predicated region
        $region93: #{tpu_custom_call.1} parent=91 // pred_check
          %p707 = pneg %p59
        $region94: #{tpu_custom_call.1} parent=91 // pred_check_branch
          %709 = sbr.rel (%p707) target = $region96
        $region95: #{tpu_custom_call.1} parent=91 // pred_region
          %s710 = sand.u32 %s49, 1
          %s711 = scalar_lea.sflag [#allocation3], %s710
          %s712 = sand.u32 %s49, 1
          %s713 = smul.addr %s712, 8
          %s714 = scalar_lea.vmem [#allocation2], %s713
          %716 = vsyncadd %s711, 0
          %s717 = smul.addr %s39, 8
          %s718 = scalar_lea.hbm %s0, %s717
          %s720 = sshll.u32 %s718, 4
          %s721 = int_to_ptr.hbm [resolvable:$true] %s720
          %s722 = sshll.u32 %s714, 4
          %s723 = int_to_ptr.vmem [resolvable:$true] %s722
          %725 = dma.hbm_to_vmem [thread:$0]  %s721, 128, %s723, %s711
        $region96: #{tpu_custom_call.1} parent=91 // pred_fallthru
          _
      $region92: #{tpu_custom_call.1} parent=5 // pred_fallthru
        _
      %p726 = scmp.le.s32.totalorder 1, %s39
      %p727 = scmp.lt.s32.totalorder %s39, 3
      %p728 = pnand %p726, %p727
      %p729 = pneg %p728
      // Predicated region
      $region97: #{tpu_custom_call.1} parent=5 // pred_check
        _
      $region98: #{tpu_custom_call.1} parent=5 // pred_check_branch
        %731 = sbr.rel (%p728) target = $region100
      $region99: #{tpu_custom_call.1} parent=5 // pred_region
        %s732 = ssub.s32 %s39, 1
        %s733 = sand.u32 %s52, 1
        %s734 = scalar_lea.sflag [#allocation3], %s733
        %s735 = sand.u32 %s52, 1
        %s736 = smul.addr %s735, 8
        %s737 = scalar_lea.vmem [#allocation2], %s736
        // Predicated region
        $region101: #{tpu_custom_call.1} parent=99 // pred_check
          %p738 = pneg %p65
        $region102: #{tpu_custom_call.1} parent=99 // pred_check_branch
          %740 = sbr.rel (%p738) target = $region104
        $region103: #{tpu_custom_call.1} parent=99 // pred_region
          %742 = dma.done %s734, 128
        $region104: #{tpu_custom_call.1} parent=99 // pred_fallthru
          _
        // Predicated region
        $region105: #{tpu_custom_call.1} parent=99 // pred_check
          %p743 = pneg %p86
        $region106: #{tpu_custom_call.1} parent=99 // pred_check_branch
          %745 = sbr.rel (%p743) target = $region108
        $region107: #{tpu_custom_call.1} parent=99 // pred_region
          %747 = dma.done [#allocation6], 128
        $region108: #{tpu_custom_call.1} parent=99 // pred_fallthru
          _
        // Predicated region
        $region109: #{tpu_custom_call.1} parent=99 // pred_check
          %p748 = pneg %p170
        $region110: #{tpu_custom_call.1} parent=99 // pred_check_branch
          %750 = sbr.rel (%p748) target = $region112
        $region111: #{tpu_custom_call.1} parent=99 // pred_region
          %752 = dma.done [#allocation6], 32
        $region112: #{tpu_custom_call.1} parent=99 // pred_fallthru
          _
        // Predicated region
        $region113: #{tpu_custom_call.1} parent=99 // pred_check
          %p753 = pneg %p191
        $region114: #{tpu_custom_call.1} parent=99 // pred_check_branch
          %755 = sbr.rel (%p753) target = $region116
        $region115: #{tpu_custom_call.1} parent=99 // pred_region
          %757 = dma.done [#allocation9], 32
        $region116: #{tpu_custom_call.1} parent=99 // pred_fallthru
          _
        // Predicated region
        $region117: #{tpu_custom_call.1} parent=99 // pred_check
          %p758 = pneg %p212
        $region118: #{tpu_custom_call.1} parent=99 // pred_check_branch
          %760 = sbr.rel (%p758) target = $region120
        $region119: #{tpu_custom_call.1} parent=99 // pred_region
          %762 = dma.done [#allocation9], 32
        $region120: #{tpu_custom_call.1} parent=99 // pred_fallthru
          _
        // Predicated region
        $region121: #{tpu_custom_call.1} parent=99 // pred_check
          %p763 = pneg %p233
        $region122: #{tpu_custom_call.1} parent=99 // pred_check_branch
          %765 = sbr.rel (%p763) target = $region124
        $region123: #{tpu_custom_call.1} parent=99 // pred_region
          %767 = dma.done [#allocation12], 512
        $region124: #{tpu_custom_call.1} parent=99 // pred_fallthru
          _
        // Predicated region
        $region125: #{tpu_custom_call.1} parent=99 // pred_check
          %p768 = pneg %p254
        $region126: #{tpu_custom_call.1} parent=99 // pred_check_branch
          %770 = sbr.rel (%p768) target = $region128
        $region127: #{tpu_custom_call.1} parent=99 // pred_region
          %772 = dma.done [#allocation12], 32
        $region128: #{tpu_custom_call.1} parent=99 // pred_fallthru
          _
        // Predicated region
        $region129: #{tpu_custom_call.1} parent=99 // pred_check
          %p773 = pneg %p275
        $region130: #{tpu_custom_call.1} parent=99 // pred_check_branch
          %775 = sbr.rel (%p773) target = $region132
        $region131: #{tpu_custom_call.1} parent=99 // pred_region
          %777 = dma.done [#allocation15], 512
        $region132: #{tpu_custom_call.1} parent=99 // pred_fallthru
          _
        // Predicated region
        $region133: #{tpu_custom_call.1} parent=99 // pred_check
          %p778 = pneg %p296
        $region134: #{tpu_custom_call.1} parent=99 // pred_check_branch
          %780 = sbr.rel (%p778) target = $region136
        $region135: #{tpu_custom_call.1} parent=99 // pred_region
          %782 = dma.done [#allocation15], 32
        $region136: #{tpu_custom_call.1} parent=99 // pred_fallthru
          _
        // Predicated region
        $region137: #{tpu_custom_call.1} parent=99 // pred_check
          %p783 = pneg %p338
        $region138: #{tpu_custom_call.1} parent=99 // pred_check_branch
          %785 = sbr.rel (%p783) target = $region140
        $region139: #{tpu_custom_call.1} parent=99 // pred_region
          %787 = dma.done [#allocation18], 32
        $region140: #{tpu_custom_call.1} parent=99 // pred_fallthru
          _
        // Predicated region
        $region141: #{tpu_custom_call.1} parent=99 // pred_check
          %p788 = pneg %p359
        $region142: #{tpu_custom_call.1} parent=99 // pred_check_branch
          %790 = sbr.rel (%p788) target = $region144
        $region143: #{tpu_custom_call.1} parent=99 // pred_region
          %792 = dma.done [#allocation18], 32
        $region144: #{tpu_custom_call.1} parent=99 // pred_fallthru
          _
        // Predicated region
        $region145: #{tpu_custom_call.1} parent=99 // pred_check
          %p793 = pneg %p380
        $region146: #{tpu_custom_call.1} parent=99 // pred_check_branch
          %795 = sbr.rel (%p793) target = $region148
        $region147: #{tpu_custom_call.1} parent=99 // pred_region
          %797 = dma.done [#allocation21], 32
        $region148: #{tpu_custom_call.1} parent=99 // pred_fallthru
          _
        // Predicated region
        $region149: #{tpu_custom_call.1} parent=99 // pred_check
          %p798 = pneg %p401
        $region150: #{tpu_custom_call.1} parent=99 // pred_check_branch
          %800 = sbr.rel (%p798) target = $region152
        $region151: #{tpu_custom_call.1} parent=99 // pred_region
          %802 = dma.done [#allocation21], 32
        $region152: #{tpu_custom_call.1} parent=99 // pred_fallthru
          _
        // Predicated region
        $region153: #{tpu_custom_call.1} parent=99 // pred_check
          %p803 = pneg %p422
        $region154: #{tpu_custom_call.1} parent=99 // pred_check_branch
          %805 = sbr.rel (%p803) target = $region156
        $region155: #{tpu_custom_call.1} parent=99 // pred_region
          %807 = dma.done [#allocation24], 32
        $region156: #{tpu_custom_call.1} parent=99 // pred_fallthru
          _
        %s808 = sand.u32 %s52, 1
        %s809 = scalar_lea.sflag [#allocation3], %s808
        %s810 = sand.u32 %s52, 1
        %s811 = smul.addr %s810, 8
        %s812 = scalar_lea.vmem [#allocation2], %s811
        %p813 = pneg %p65
        %p814 = pneg %p62
        %p815 = pneg %p86
        %p816 = pneg %p83
        %p817 = pneg %p107
        %p818 = pneg %p104
        %p819 = pneg %p128
        %p820 = pneg %p125
        %p821 = pneg %p149
        %p822 = pneg %p146
        %p823 = pneg %p170
        %p824 = pneg %p167
        %p825 = pneg %p191
        %p826 = pneg %p188
        %p827 = pneg %p212
        %p828 = pneg %p209
        %p829 = pneg %p233
        %p830 = pneg %p230
        %p831 = pneg %p254
        %p832 = pneg %p251
        %p833 = pneg %p275
        %p834 = pneg %p272
        %p835 = pneg %p296
        %p836 = pneg %p293
        %p837 = pneg %p317
        %p838 = pneg %p314
        %p839 = pneg %p338
        %p840 = pneg %p335
        %p841 = pneg %p359
        %p842 = pneg %p356
        %p843 = pneg %p380
        %p844 = pneg %p377
        %p845 = pneg %p401
        %p846 = pneg %p398
        %p847 = pneg %p422
        %p848 = pneg %p419
        %p849 = pneg %p443
        %p850 = pneg %p440
        %p851 = pneg %p464
        %p852 = pneg %p461
        %p853 = pneg %p490
        %p854 = pneg %p487
        %s855 = sand.u32 %s477, 1
        %s856 = scalar_lea.sflag [#allocation4], %s855
        %s857 = sand.u32 %s477, 1
        %s858 = smul.addr %s857, 8
        %s859 = scalar_lea.vmem [#allocation25], %s858
        %v861 = vld [vmem:[%s737] sm:$0xff]
        %v862 = vmul.f32 %v861, 5.656854
        %v863 = vld [vmem:[#allocation5] sm:$0xff]
        %v864 = vadd.f32 %v862, %v863
        loop: start=0, step=1, limit=2
        $region157: #{tpu_custom_call.1} parent=99 // loop_pre_header
          _
        $region158: #{tpu_custom_call.1} parent=99 // loop_header
          %s866 = sphi 0, %s870
          %p867 = scmp.ge.s32.totalorder %s866, 2
          %v871 = vphi %v864, %v1501
        $region159: #{tpu_custom_call.1} parent=99 // loop_header_branch
          %869 = sbr.rel (%p867) target = $region163
        $region160: #{tpu_custom_call.1} parent=99 // loop_body
          %v872 = vpack.c.bf16 %v871, %v871
          %s873 = smul.u32 %s866, 4
          %s874 = smul.addr %s873, 4
          %s875 = scalar_lea.vmem %s2, %s874
          %v876 = vld [vmem:[%s875] sm:$0xf]
          %v877 = vld [vmem:[%s875 + $0x4] sm:$0xf]
          %v878 = vld [vmem:[%s875 + $0x8] sm:$0xf]
          %v879 = vld [vmem:[%s875 + $0xc] sm:$0xf]
          %s880 = scalar_lea.vmem [#allocation7], %s866
          %v881 = vld [vmem:[%s880] sm:$0x1]
          %v883 = vperm.slane %v881, 0
          %v889 = vunpack.c.l.b16 %v876
          %v890 = vunpack.c.l.b16 %v877
          %v891 = vunpack.c.l.b16 %v878
          %v892 = vunpack.c.l.b16 %v879
          %v893 = vpack.c.b16 %v890, %v889
          %v894 = vpack.c.b16 %v892, %v891
          %vm897 = vcmask 261120
          %v899 = vsel %vm897, %v872, 0
          %901 = vmatpush.bf16.msra.mxu0 0
          %902 = vmatpush.bf16.msra.mxu0 0
          %903 = vmatpush.bf16.msra.mxu0 0
          %904 = vmatpush.bf16.msra.mxu0 0
          %905 = vmatpush.bf16.msra.mxu0 0
          %906 = vmatpush.bf16.msra.mxu0 0
          %907 = vmatpush.bf16.msra.mxu0 %v894
          %908 = vmatpush.bf16.msra.mxu0 %v893
          %909 = vmatmul.bf16.gmra.mxu0 %v899
          %v910 = vpop.f32.mrf.mxu0
          %v911 = vadd.f32 %v883, %v910
          %v912 = vpop.f32.mrf.mxu0
          %913 = vdwg.mxu0
          %s914 = smul.addr %s873, 4
          %s915 = scalar_lea.vmem %s3, %s914
          %v916 = vld [vmem:[%s915] sm:$0xf]
          %v917 = vld [vmem:[%s915 + $0x4] sm:$0xf]
          %v918 = vld [vmem:[%s915 + $0x8] sm:$0xf]
          %v919 = vld [vmem:[%s915 + $0xc] sm:$0xf]
          %s920 = scalar_lea.vmem [#allocation8], %s866
          %v921 = vld [vmem:[%s920] sm:$0x1]
          %v923 = vperm.slane %v921, 0
          %v929 = vunpack.c.l.b16 %v916
          %v930 = vunpack.c.l.b16 %v917
          %v931 = vunpack.c.l.b16 %v918
          %v932 = vunpack.c.l.b16 %v919
          %v933 = vpack.c.b16 %v930, %v929
          %v934 = vpack.c.b16 %v932, %v931
          %937 = vmatpush.bf16.msra.mxu0 0
          %938 = vmatpush.bf16.msra.mxu0 0
          %939 = vmatpush.bf16.msra.mxu0 0
          %940 = vmatpush.bf16.msra.mxu0 0
          %941 = vmatpush.bf16.msra.mxu0 0
          %942 = vmatpush.bf16.msra.mxu0 0
          %943 = vmatpush.bf16.msra.mxu0 %v934
          %944 = vmatpush.bf16.msra.mxu0 %v933
          %945 = vmatmul.bf16.gmra.mxu0 %v899
          %v946 = vpop.f32.mrf.mxu0
          %v947 = vadd.f32 %v923, %v946
          %v948 = vpop.f32.mrf.mxu0
          %949 = vdwg.mxu0
          %s950 = smul.addr %s873, 4
          %s951 = scalar_lea.vmem %s4, %s950
          %v952 = vld [vmem:[%s951] sm:$0xf]
          %v953 = vld [vmem:[%s951 + $0x4] sm:$0xf]
          %v954 = vld [vmem:[%s951 + $0x8] sm:$0xf]
          %v955 = vld [vmem:[%s951 + $0xc] sm:$0xf]
          %s956 = scalar_lea.vmem [#allocation10], %s866
          %v957 = vld [vmem:[%s956] sm:$0x1]
          %v959 = vperm.slane %v957, 0
          %v965 = vunpack.c.l.b16 %v952
          %v966 = vunpack.c.l.b16 %v953
          %v967 = vunpack.c.l.b16 %v954
          %v968 = vunpack.c.l.b16 %v955
          %v969 = vpack.c.b16 %v966, %v965
          %v970 = vpack.c.b16 %v968, %v967
          %973 = vmatpush.bf16.msra.mxu0 0
          %974 = vmatpush.bf16.msra.mxu0 0
          %975 = vmatpush.bf16.msra.mxu0 0
          %976 = vmatpush.bf16.msra.mxu0 0
          %977 = vmatpush.bf16.msra.mxu0 0
          %978 = vmatpush.bf16.msra.mxu0 0
          %979 = vmatpush.bf16.msra.mxu0 %v970
          %980 = vmatpush.bf16.msra.mxu0 %v969
          %981 = vmatmul.bf16.gmra.mxu0 %v899
          %v982 = vpop.f32.mrf.mxu0
          %v983 = vadd.f32 %v959, %v982
          %v984 = vpop.f32.mrf.mxu0
          %985 = vdwg.mxu0
          %987 = vrot.lane.b32.xlu0 %v911, 120
          %v988 = vpop.permute.xlu0 %987
          %990 = vrot.lane.b32.xlu0 %v911, 112
          %v991 = vpop.permute.xlu0 %990
          %993 = vrot.lane.b32.xlu0 %v911, 104
          %v994 = vpop.permute.xlu0 %993
          %v996 = vpack.c.bf16 %v911, %v911
          %v997 = vpack.c.bf16 %v988, %v988
          %v998 = vpack.c.bf16 %v991, %v991
          %v999 = vpack.c.bf16 %v994, %v994
          %1001 = vrot.lane.b32.xlu0 %v947, 120
          %v1002 = vpop.permute.xlu0 %1001
          %1004 = vrot.lane.b32.xlu0 %v947, 112
          %v1005 = vpop.permute.xlu0 %1004
          %1007 = vrot.lane.b32.xlu0 %v947, 104
          %v1008 = vpop.permute.xlu0 %1007
          %v1010 = vpack.c.bf16 %v947, %v947
          %v1011 = vpack.c.bf16 %v1002, %v1002
          %v1012 = vpack.c.bf16 %v1005, %v1005
          %v1013 = vpack.c.bf16 %v1008, %v1008
          %1015 = vrot.lane.b32.xlu0 %v983, 120
          %v1016 = vpop.permute.xlu0 %1015
          %1018 = vrot.lane.b32.xlu0 %v983, 112
          %v1019 = vpop.permute.xlu0 %1018
          %1021 = vrot.lane.b32.xlu0 %v983, 104
          %v1022 = vpop.permute.xlu0 %1021
          %v1024 = vpack.c.bf16 %v983, %v983
          %v1025 = vpack.c.bf16 %v1016, %v1016
          %v1026 = vpack.c.bf16 %v1019, %v1019
          %v1027 = vpack.c.bf16 %v1022, %v1022
          %vm1028 = vcmask 64512
          %v1030 = vsel %vm1028, %v996, 0
          %v1033 = vsel %vm1028, %v1010, 0
          %1035 = vmatpush.bf16.xpose.msra.mxu0 0
          %1036 = vmatpush.bf16.xpose.msra.mxu0 0
          %1037 = vmatpush.bf16.xpose.msra.mxu0 0
          %1038 = vmatpush.bf16.xpose.msra.mxu0 0
          %1039 = vmatpush.bf16.xpose.msra.mxu0 0
          %1040 = vmatpush.bf16.xpose.msra.mxu0 0
          %1041 = vmatpush.bf16.xpose.msra.mxu0 0
          %1042 = vmatpush.bf16.xpose.msra.mxu0 %v1033
          %1043 = vmatmul.bf16.gmra.mxu0 %v1030
          %v1044 = vpop.f32.mrf.mxu0
          %v1045 = vadd.f32 0.0, %v1044
          %v1046 = vpop.f32.mrf.mxu0
          %1047 = vdwg.mxu0
          %v1049 = vsel %vm1028, %v997, 0
          %v1052 = vsel %vm1028, %v1011, 0
          %1054 = vmatpush.bf16.xpose.msra.mxu0 0
          %1055 = vmatpush.bf16.xpose.msra.mxu0 0
          %1056 = vmatpush.bf16.xpose.msra.mxu0 0
          %1057 = vmatpush.bf16.xpose.msra.mxu0 0
          %1058 = vmatpush.bf16.xpose.msra.mxu0 0
          %1059 = vmatpush.bf16.xpose.msra.mxu0 0
          %1060 = vmatpush.bf16.xpose.msra.mxu0 0
          %1061 = vmatpush.bf16.xpose.msra.mxu0 %v1052
          %1062 = vmatmul.bf16.gmra.mxu0 %v1049
          %v1063 = vpop.f32.mrf.mxu0
          %v1064 = vadd.f32 0.0, %v1063
          %v1065 = vpop.f32.mrf.mxu0
          %1066 = vdwg.mxu0
          %v1068 = vsel %vm1028, %v998, 0
          %v1071 = vsel %vm1028, %v1012, 0
          %1073 = vmatpush.bf16.xpose.msra.mxu0 0
          %1074 = vmatpush.bf16.xpose.msra.mxu0 0
          %1075 = vmatpush.bf16.xpose.msra.mxu0 0
          %1076 = vmatpush.bf16.xpose.msra.mxu0 0
          %1077 = vmatpush.bf16.xpose.msra.mxu0 0
          %1078 = vmatpush.bf16.xpose.msra.mxu0 0
          %1079 = vmatpush.bf16.xpose.msra.mxu0 0
          %1080 = vmatpush.bf16.xpose.msra.mxu0 %v1071
          %1081 = vmatmul.bf16.gmra.mxu0 %v1068
          %v1082 = vpop.f32.mrf.mxu0
          %v1083 = vadd.f32 0.0, %v1082
          %v1084 = vpop.f32.mrf.mxu0
          %1085 = vdwg.mxu0
          %v1087 = vsel %vm1028, %v999, 0
          %v1090 = vsel %vm1028, %v1013, 0
          %1092 = vmatpush.bf16.xpose.msra.mxu0 0
          %1093 = vmatpush.bf16.xpose.msra.mxu0 0
          %1094 = vmatpush.bf16.xpose.msra.mxu0 0
          %1095 = vmatpush.bf16.xpose.msra.mxu0 0
          %1096 = vmatpush.bf16.xpose.msra.mxu0 0
          %1097 = vmatpush.bf16.xpose.msra.mxu0 0
          %1098 = vmatpush.bf16.xpose.msra.mxu0 0
          %1099 = vmatpush.bf16.xpose.msra.mxu0 %v1090
          %1100 = vmatmul.bf16.gmra.mxu0 %v1087
          %v1101 = vpop.f32.mrf.mxu0
          %v1102 = vadd.f32 0.0, %v1101
          %v1103 = vpop.f32.mrf.mxu0
          %1104 = vdwg.mxu0
          %v1105 = vmul.f32 %v1045, 0.35355338
          %v1106 = vmul.f32 %v1064, 0.35355338
          %v1107 = vmul.f32 %v1083, 0.35355338
          %v1108 = vmul.f32 %v1102, 0.35355338
          %v1109 = vsel %vm1028, %v1105, -inf
          %1110 = vmax.xlane.f32.xlu0 %v1109
          %v1111 = vpop.xlane.xlu0 %1110
          %v1112 = vsel %vm1028, %v1106, -inf
          %1113 = vmax.xlane.f32.xlu0 %v1112
          %v1114 = vpop.xlane.xlu0 %1113
          %v1115 = vsel %vm1028, %v1107, -inf
          %1116 = vmax.xlane.f32.xlu0 %v1115
          %v1117 = vpop.xlane.xlu0 %1116
          %v1118 = vsel %vm1028, %v1108, -inf
          %1119 = vmax.xlane.f32.xlu0 %v1118
          %v1120 = vpop.xlane.xlu0 %1119
          %v1121 = vsub.f32 %v1105, %v1111
          %v1122 = vsub.f32 %v1106, %v1114
          %v1123 = vsub.f32 %v1107, %v1117
          %v1124 = vsub.f32 %v1108, %v1120
          %v1125 = vmul.f32 %v1121, 1.442695
          %v1126 = vpow.pop %v1125
          %v1127 = vmul.f32 %v1122, 1.442695
          %v1128 = vpow.pop %v1127
          %v1129 = vmul.f32 %v1123, 1.442695
          %v1130 = vpow.pop %v1129
          %v1131 = vmul.f32 %v1124, 1.442695
          %v1132 = vpow.pop %v1131
          %v1133 = vsel %vm1028, %v1126, 0.0
          %1134 = vadd.xlane.f32.xlu0 %v1133
          %v1135 = vpop.xlane.xlu0 %1134
          %v1136 = vsel %vm1028, %v1128, 0.0
          %1137 = vadd.xlane.f32.xlu0 %v1136
          %v1138 = vpop.xlane.xlu0 %1137
          %v1139 = vsel %vm1028, %v1130, 0.0
          %1140 = vadd.xlane.f32.xlu0 %v1139
          %v1141 = vpop.xlane.xlu0 %1140
          %v1142 = vsel %vm1028, %v1132, 0.0
          %1143 = vadd.xlane.f32.xlu0 %v1142
          %v1144 = vpop.xlane.xlu0 %1143
          %v1145 = vrcp.pop %v1135
          %v1146 = vrcp.pop %v1138
          %v1147 = vrcp.pop %v1141
          %v1148 = vrcp.pop %v1144
          %v1149 = vmul.f32 %v1126, %v1145
          %v1150 = vmul.f32 %v1128, %v1146
          %v1151 = vmul.f32 %v1130, %v1147
          %v1152 = vmul.f32 %v1132, %v1148
          %v1153 = vpack.c.bf16 %v1149, %v1149
          %v1154 = vpack.c.bf16 %v1150, %v1150
          %v1155 = vpack.c.bf16 %v1151, %v1151
          %v1156 = vpack.c.bf16 %v1152, %v1152
          %v1158 = vsel %vm1028, %v1153, 0
          %vm1160 = vcmask 1043456
          %v1162 = vsel %vm1160, %v1024, 0
          %1164 = vmatpush.bf16.msra.mxu0 0
          %1165 = vmatpush.bf16.msra.mxu0 0
          %1166 = vmatpush.bf16.msra.mxu0 0
          %1167 = vmatpush.bf16.msra.mxu0 0
          %1168 = vmatpush.bf16.msra.mxu0 0
          %1169 = vmatpush.bf16.msra.mxu0 0
          %1170 = vmatpush.bf16.msra.mxu0 0
          %1171 = vmatpush.bf16.msra.mxu0 %v1162
          %1172 = vmatmul.bf16.gmra.mxu0 %v1158
          %v1173 = vpop.f32.mrf.mxu0
          %v1174 = vadd.f32 0.0, %v1173
          %v1175 = vpop.f32.mrf.mxu0
          %1176 = vdwg.mxu0
          %v1178 = vsel %vm1028, %v1154, 0
          %v1181 = vsel %vm1160, %v1025, 0
          %1183 = vmatpush.bf16.msra.mxu0 0
          %1184 = vmatpush.bf16.msra.mxu0 0
          %1185 = vmatpush.bf16.msra.mxu0 0
          %1186 = vmatpush.bf16.msra.mxu0 0
          %1187 = vmatpush.bf16.msra.mxu0 0
          %1188 = vmatpush.bf16.msra.mxu0 0
          %1189 = vmatpush.bf16.msra.mxu0 0
          %1190 = vmatpush.bf16.msra.mxu0 %v1181
          %1191 = vmatmul.bf16.gmra.mxu0 %v1178
          %v1192 = vpop.f32.mrf.mxu0
          %v1193 = vadd.f32 0.0, %v1192
          %v1194 = vpop.f32.mrf.mxu0
          %1195 = vdwg.mxu0
          %v1197 = vsel %vm1028, %v1155, 0
          %v1200 = vsel %vm1160, %v1026, 0
          %1202 = vmatpush.bf16.msra.mxu0 0
          %1203 = vmatpush.bf16.msra.mxu0 0
          %1204 = vmatpush.bf16.msra.mxu0 0
          %1205 = vmatpush.bf16.msra.mxu0 0
          %1206 = vmatpush.bf16.msra.mxu0 0
          %1207 = vmatpush.bf16.msra.mxu0 0
          %1208 = vmatpush.bf16.msra.mxu0 0
          %1209 = vmatpush.bf16.msra.mxu0 %v1200
          %1210 = vmatmul.bf16.gmra.mxu0 %v1197
          %v1211 = vpop.f32.mrf.mxu0
          %v1212 = vadd.f32 0.0, %v1211
          %v1213 = vpop.f32.mrf.mxu0
          %1214 = vdwg.mxu0
          %v1216 = vsel %vm1028, %v1156, 0
          %v1219 = vsel %vm1160, %v1027, 0
          %1221 = vmatpush.bf16.msra.mxu0 0
          %1222 = vmatpush.bf16.msra.mxu0 0
          %1223 = vmatpush.bf16.msra.mxu0 0
          %1224 = vmatpush.bf16.msra.mxu0 0
          %1225 = vmatpush.bf16.msra.mxu0 0
          %1226 = vmatpush.bf16.msra.mxu0 0
          %1227 = vmatpush.bf16.msra.mxu0 0
          %1228 = vmatpush.bf16.msra.mxu0 %v1219
          %1229 = vmatmul.bf16.gmra.mxu0 %v1216
          %v1230 = vpop.f32.mrf.mxu0
          %v1231 = vadd.f32 0.0, %v1230
          %v1232 = vpop.f32.mrf.mxu0
          %1233 = vdwg.mxu0
          %v1234 = vpack.c.bf16 %v1174, %v1174
          %v1235 = vpack.c.bf16 %v1193, %v1193
          %v1236 = vpack.c.bf16 %v1212, %v1212
          %v1237 = vpack.c.bf16 %v1231, %v1231
          %s1238 = smul.addr %s873, 4
          %s1239 = scalar_lea.vmem [#allocation11], %s1238
          %v1240 = vld [vmem:[%s1239] sm:$0xf]
          %v1241 = vld [vmem:[%s1239 + $0x4] sm:$0xf]
          %v1242 = vld [vmem:[%s1239 + $0x8] sm:$0xf]
          %v1243 = vld [vmem:[%s1239 + $0xc] sm:$0xf]
          %v1245 = vsel %vm1028, %v1234, 0
          %v1248 = vsel %vm1160, %v1240, 0
          %1250 = vmatpush.bf16.msra.mxu0 0
          %1251 = vmatpush.bf16.msra.mxu0 0
          %1252 = vmatpush.bf16.msra.mxu0 0
          %1253 = vmatpush.bf16.msra.mxu0 0
          %1254 = vmatpush.bf16.msra.mxu0 0
          %1255 = vmatpush.bf16.msra.mxu0 0
          %1256 = vmatpush.bf16.msra.mxu0 0
          %1257 = vmatpush.bf16.msra.mxu0 %v1248
          %1258 = vmatmul.bf16.gmra.mxu0 %v1245
          %v1259 = vpop.f32.mrf.mxu0
          %v1260 = vadd.f32 0.0, %v1259
          %v1261 = vpop.f32.mrf.mxu0
          %1262 = vdwg.mxu0
          %v1264 = vsel %vm1028, %v1235, 0
          %v1267 = vsel %vm1160, %v1241, 0
          %1269 = vmatpush.bf16.msra.mxu0 0
          %1270 = vmatpush.bf16.msra.mxu0 0
          %1271 = vmatpush.bf16.msra.mxu0 0
          %1272 = vmatpush.bf16.msra.mxu0 0
          %1273 = vmatpush.bf16.msra.mxu0 0
          %1274 = vmatpush.bf16.msra.mxu0 0
          %1275 = vmatpush.bf16.msra.mxu0 0
          %1276 = vmatpush.bf16.msra.mxu0 %v1267
          %1277 = vmatmul.bf16.gmra.mxu0 %v1264
          %v1278 = vpop.f32.mrf.mxu0
          %v1279 = vadd.f32 0.0, %v1278
          %v1280 = vpop.f32.mrf.mxu0
          %1281 = vdwg.mxu0
          %v1283 = vsel %vm1028, %v1236, 0
          %v1286 = vsel %vm1160, %v1242, 0
          %1288 = vmatpush.bf16.msra.mxu0 0
          %1289 = vmatpush.bf16.msra.mxu0 0
          %1290 = vmatpush.bf16.msra.mxu0 0
          %1291 = vmatpush.bf16.msra.mxu0 0
          %1292 = vmatpush.bf16.msra.mxu0 0
          %1293 = vmatpush.bf16.msra.mxu0 0
          %1294 = vmatpush.bf16.msra.mxu0 0
          %1295 = vmatpush.bf16.msra.mxu0 %v1286
          %1296 = vmatmul.bf16.gmra.mxu0 %v1283
          %v1297 = vpop.f32.mrf.mxu0
          %v1298 = vadd.f32 0.0, %v1297
          %v1299 = vpop.f32.mrf.mxu0
          %1300 = vdwg.mxu0
          %v1302 = vsel %vm1028, %v1237, 0
          %v1305 = vsel %vm1160, %v1243, 0
          %1307 = vmatpush.bf16.msra.mxu0 0
          %1308 = vmatpush.bf16.msra.mxu0 0
          %1309 = vmatpush.bf16.msra.mxu0 0
          %1310 = vmatpush.bf16.msra.mxu0 0
          %1311 = vmatpush.bf16.msra.mxu0 0
          %1312 = vmatpush.bf16.msra.mxu0 0
          %1313 = vmatpush.bf16.msra.mxu0 0
          %1314 = vmatpush.bf16.msra.mxu0 %v1305
          %1315 = vmatmul.bf16.gmra.mxu0 %v1302
          %v1316 = vpop.f32.mrf.mxu0
          %v1317 = vadd.f32 0.0, %v1316
          %v1318 = vpop.f32.mrf.mxu0
          %1319 = vdwg.mxu0
          %v1320 = vsel %vm897, %v1260, 0.0
          %v1321 = vsel %vm897, %v1279, 0.0
          %v1322 = vadd.f32 %v1320, %v1321
          %v1323 = vsel %vm897, %v1298, 0.0
          %v1324 = vadd.f32 %v1322, %v1323
          %v1325 = vsel %vm897, %v1317, 0.0
          %v1326 = vadd.f32 %v1324, %v1325
          %s1327 = scalar_lea.vmem [#allocation13], %s866
          %v1328 = vld [vmem:[%s1327] sm:$0x1]
          %v1330 = vperm.slane %v1328, 0
          %v1332 = vadd.f32 %v1326, %v1330
          %v1333 = vadd.f32 %v871, %v1332
          %s1334 = scalar_lea.vmem [#allocation19], %s866
          %v1335 = vld [vmem:[%s1334] sm:$0x1]
          %s1336 = scalar_lea.vmem [#allocation20], %s866
          %v1337 = vld [vmem:[%s1336] sm:$0x1]
          %v1338 = vsel %vm897, %v1333, 0.0
          %1339 = vadd.xlane.f32.xlu0 %v1338
          %v1340 = vpop.xlane.xlu0 %1339
          %v1341 = vmul.f32 %v1340, 0.03125
          %v1342 = vsub.f32 %v1333, %v1341
          %v1343 = vmul.f32 %v1342, %v1342
          %v1344 = vsel %vm897, %v1343, 0.0
          %1345 = vadd.xlane.f32.xlu0 %v1344
          %v1346 = vpop.xlane.xlu0 %1345
          %v1347 = vmul.f32 %v1346, 0.03125
          %v1348 = vadd.f32 %v1347, 1e-05
          %v1349 = vrsqrt.pop %v1348
          %v1350 = vmul.f32 %v1349, %v1348
          %v1351 = vmul.f32 %v1350, %v1349
          %v1352 = vmul.f32 0.5, %v1351
          %v1353 = vsub.f32 1.5, %v1352
          %v1354 = vmul.f32 %v1349, %v1353
          %vm1355 = vweird.f32 %v1348
          %vm1356 = vweird.f32 %v1349
          %vm1357 = vmor %vm1355, %vm1356
          %v1358 = vsel %vm1357, %v1349, %v1354
          %v1359 = vmul.f32 %v1342, %v1358
          %v1361 = vperm.slane %v1335, 0
          %v1363 = vmul.f32 %v1359, %v1361
          %v1365 = vperm.slane %v1337, 0
          %v1367 = vadd.f32 %v1363, %v1365
          %v1368 = vpack.c.bf16 %v1367, %v1367
          %s1369 = smul.addr %s873, 4
          %s1370 = scalar_lea.vmem [#allocation14], %s1369
          %v1371 = vld [vmem:[%s1370] sm:$0xf]
          %v1372 = vld [vmem:[%s1370 + $0x4] sm:$0xf]
          %v1373 = vld [vmem:[%s1370 + $0x8] sm:$0xf]
          %v1374 = vld [vmem:[%s1370 + $0xc] sm:$0xf]
          %s1375 = scalar_lea.vmem [#allocation16], %s866
          %v1376 = vld [vmem:[%s1375] sm:$0x1]
          %v1378 = vperm.slane %v1376, 0
          %v1384 = vunpack.c.l.b16 %v1371
          %v1385 = vunpack.c.l.b16 %v1372
          %v1386 = vunpack.c.l.b16 %v1373
          %v1387 = vunpack.c.l.b16 %v1374
          %v1388 = vpack.c.b16 %v1385, %v1384
          %v1389 = vpack.c.b16 %v1387, %v1386
          %v1393 = vsel %vm897, %v1368, 0
          %1395 = vmatpush.bf16.msra.mxu0 0
          %1396 = vmatpush.bf16.msra.mxu0 0
          %1397 = vmatpush.bf16.msra.mxu0 0
          %1398 = vmatpush.bf16.msra.mxu0 0
          %1399 = vmatpush.bf16.msra.mxu0 0
          %1400 = vmatpush.bf16.msra.mxu0 0
          %1401 = vmatpush.bf16.msra.mxu0 %v1389
          %1402 = vmatpush.bf16.msra.mxu0 %v1388
          %1403 = vmatmul.bf16.gmra.mxu0 %v1393
          %v1404 = vpop.f32.mrf.mxu0
          %v1405 = vadd.f32 %v1378, %v1404
          %v1406 = vpop.f32.mrf.mxu0
          %1407 = vdwg.mxu0
          %v1408 = vmax.f32 %v1405, 0.0
          %v1409 = vpack.c.bf16 %v1408, %v1408
          %s1410 = smul.u32 %s866, 8
          %s1411 = smul.addr %s1410, 4
          %s1412 = scalar_lea.vmem %s12, %s1411
          %v1413 = vld [vmem:[%s1412] sm:$0xf]
          %v1414 = vld [vmem:[%s1412 + $0x4] sm:$0xf]
          %v1415 = vld [vmem:[%s1412 + $0x8] sm:$0xf]
          %v1416 = vld [vmem:[%s1412 + $0xc] sm:$0xf]
          %v1417 = vld [vmem:[%s1412 + $0x10] sm:$0xf]
          %v1418 = vld [vmem:[%s1412 + $0x14] sm:$0xf]
          %v1419 = vld [vmem:[%s1412 + $0x18] sm:$0xf]
          %v1420 = vld [vmem:[%s1412 + $0x1c] sm:$0xf]
          %s1421 = scalar_lea.vmem [#allocation17], %s866
          %v1422 = vld [vmem:[%s1421] sm:$0x1]
          %v1424 = vperm.slane %v1422, 0
          %v1434 = vunpack.c.l.b16 %v1413
          %v1435 = vunpack.c.l.b16 %v1414
          %v1436 = vunpack.c.l.b16 %v1415
          %v1437 = vunpack.c.l.b16 %v1416
          %v1438 = vunpack.c.l.b16 %v1417
          %v1439 = vunpack.c.l.b16 %v1418
          %v1440 = vunpack.c.l.b16 %v1419
          %v1441 = vunpack.c.l.b16 %v1420
          %v1442 = vpack.c.b16 %v1435, %v1434
          %v1443 = vpack.c.b16 %v1437, %v1436
          %v1444 = vpack.c.b16 %v1439, %v1438
          %v1445 = vpack.c.b16 %v1441, %v1440
          %vm1450 = vcmask 523264
          %v1452 = vsel %vm1450, %v1409, 0
          %1454 = vmatpush.bf16.msra.mxu0 0
          %1455 = vmatpush.bf16.msra.mxu0 0
          %1456 = vmatpush.bf16.msra.mxu0 0
          %1457 = vmatpush.bf16.msra.mxu0 0
          %1458 = vmatpush.bf16.msra.mxu0 %v1445
          %1459 = vmatpush.bf16.msra.mxu0 %v1444
          %1460 = vmatpush.bf16.msra.mxu0 %v1443
          %1461 = vmatpush.bf16.msra.mxu0 %v1442
          %1462 = vmatmul.bf16.gmra.mxu0 %v1452
          %v1463 = vpop.f32.mrf.mxu0
          %v1464 = vadd.f32 %v1424, %v1463
          %v1465 = vpop.f32.mrf.mxu0
          %1466 = vdwg.mxu0
          %v1467 = vadd.f32 %v1367, %v1464
          %s1468 = scalar_lea.vmem [#allocation22], %s866
          %v1469 = vld [vmem:[%s1468] sm:$0x1]
          %s1470 = scalar_lea.vmem [#allocation23], %s866
          %v1471 = vld [vmem:[%s1470] sm:$0x1]
          %v1472 = vsel %vm897, %v1467, 0.0
          %1473 = vadd.xlane.f32.xlu0 %v1472
          %v1474 = vpop.xlane.xlu0 %1473
          %v1475 = vmul.f32 %v1474, 0.03125
          %v1476 = vsub.f32 %v1467, %v1475
          %v1477 = vmul.f32 %v1476, %v1476
          %v1478 = vsel %vm897, %v1477, 0.0
          %1479 = vadd.xlane.f32.xlu0 %v1478
          %v1480 = vpop.xlane.xlu0 %1479
          %v1481 = vmul.f32 %v1480, 0.03125
          %v1482 = vadd.f32 %v1481, 1e-05
          %v1483 = vrsqrt.pop %v1482
          %v1484 = vmul.f32 %v1483, %v1482
          %v1485 = vmul.f32 %v1484, %v1483
          %v1486 = vmul.f32 0.5, %v1485
          %v1487 = vsub.f32 1.5, %v1486
          %v1488 = vmul.f32 %v1483, %v1487
          %vm1489 = vweird.f32 %v1482
          %vm1490 = vweird.f32 %v1483
          %vm1491 = vmor %vm1489, %vm1490
          %v1492 = vsel %vm1491, %v1483, %v1488
          %v1493 = vmul.f32 %v1476, %v1492
          %v1495 = vperm.slane %v1469, 0
          %v1497 = vmul.f32 %v1493, %v1495
          %v1499 = vperm.slane %v1471, 0
          %v1501 = vadd.f32 %v1497, %v1499
        $region161: #{tpu_custom_call.1} parent=99 // loop_footer
          %s870 = sadd.s32 1, %s866
        $region162: #{tpu_custom_call.1} parent=99 // loop_footer_branch
          %865 = sbr.rel target = $region158
        $region163: #{tpu_custom_call.1} parent=99 // loop_exit
          _
        %v1502 = vpack.c.bf16 %v871, %v871
        %v1503 = vld [vmem:[%s18] sm:$0xf]
        %v1504 = vld [vmem:[%s18 + $0x4] sm:$0xf]
        %v1505 = vld [vmem:[%s18 + $0x8] sm:$0xf]
        %v1506 = vld [vmem:[%s18 + $0xc] sm:$0xf]
        %v1507 = vld [vmem:[%s19] sm:$0x1]
        %v1509 = vperm.slane %v1507, 0
        %v1515 = vunpack.c.l.b16 %v1503
        %v1516 = vunpack.c.l.b16 %v1504
        %v1517 = vunpack.c.l.b16 %v1505
        %v1518 = vunpack.c.l.b16 %v1506
        %v1519 = vpack.c.b16 %v1516, %v1515
        %v1520 = vpack.c.b16 %v1518, %v1517
        %vm1523 = vcmask 261120
        %v1525 = vsel %vm1523, %v1502, 0
        %1527 = vmatpush.bf16.msra.mxu0 0
        %1528 = vmatpush.bf16.msra.mxu0 0
        %1529 = vmatpush.bf16.msra.mxu0 0
        %1530 = vmatpush.bf16.msra.mxu0 0
        %1531 = vmatpush.bf16.msra.mxu0 0
        %1532 = vmatpush.bf16.msra.mxu0 0
        %1533 = vmatpush.bf16.msra.mxu0 %v1520
        %1534 = vmatpush.bf16.msra.mxu0 %v1519
        %1535 = vmatmul.bf16.gmra.mxu0 %v1525
        %v1536 = vpop.f32.mrf.mxu0
        %v1537 = vadd.f32 %v1509, %v1536
        %v1538 = vpop.f32.mrf.mxu0
        %1539 = vdwg.mxu0
        %v1540 = vmax.f32 %v1537, 0.0
        %1541 = vst.msk [vmem:[%s859] sm:$0xff] %vm1523, %v1540
        %s1542 = sand.u32 %s477, 1
        %s1543 = scalar_lea.sflag [#allocation4], %s1542
        %s1544 = sand.u32 %s477, 1
        %s1545 = smul.addr %s1544, 8
        %s1546 = scalar_lea.vmem [#allocation25], %s1545
        // Predicated region
        $region164: #{tpu_custom_call.1} parent=99 // pred_check
          %p1547 = pneg %p487
        $region165: #{tpu_custom_call.1} parent=99 // pred_check_branch
          %1549 = sbr.rel (%p1547) target = $region167
        $region166: #{tpu_custom_call.1} parent=99 // pred_region
          %1551 = vsyncadd %s1543, 0
          %s1552 = smul.addr %s44, 8
          %s1553 = scalar_lea.hbm %s20, %s1552
          %s1555 = sshll.u32 %s1546, 4
          %s1556 = int_to_ptr.vmem [resolvable:$true] %s1555
          %s1557 = sshll.u32 %s1553, 4
          %s1558 = int_to_ptr.hbm [resolvable:$true] %s1557
          %1560 = dma.vmem_to_hbm [thread:$0]  %s1556, 128, %s1558, %s1543
        $region167: #{tpu_custom_call.1} parent=99 // pred_fallthru
          _
      $region100: #{tpu_custom_call.1} parent=5 // pred_fallthru
        _
      %p1561 = scmp.le.s32.totalorder 2, %s39
      // Predicated region
      $region168: #{tpu_custom_call.1} parent=5 // pred_check
        %p1562 = pneg %p1561
      $region169: #{tpu_custom_call.1} parent=5 // pred_check_branch
        %1564 = sbr.rel (%p1562) target = $region171
      $region170: #{tpu_custom_call.1} parent=5 // pred_region
        %s1565 = ssub.s32 %s39, 2
        // Predicated region
        $region172: #{tpu_custom_call.1} parent=170 // pred_check
          %p1566 = pneg %p493
        $region173: #{tpu_custom_call.1} parent=170 // pred_check_branch
          %1568 = sbr.rel (%p1566) target = $region175
        $region174: #{tpu_custom_call.1} parent=170 // pred_region
          %s1569 = sand.u32 %s478, 1
          %s1570 = scalar_lea.sflag [#allocation4], %s1569
          %s1571 = sand.u32 %s478, 1
          %s1572 = smul.addr %s1571, 8
          %s1573 = scalar_lea.vmem [#allocation25], %s1572
          %1575 = dma.done %s1570, 128
        $region175: #{tpu_custom_call.1} parent=170 // pred_fallthru
          _
      $region171: #{tpu_custom_call.1} parent=5 // pred_fallthru
        _
    $region6: #{tpu_custom_call.1} parent=1 // loop_footer
      %s43 = sadd.s32 1, %s39
    $region7: #{tpu_custom_call.1} parent=1 // loop_footer_branch
      %38 = sbr.rel target = $region3
    $region8: #{tpu_custom_call.1} parent=1 // loop_exit
      _
    %1576 = vsyncpa [#allocation3], 1
    %s1577 = scalar_lea.sflag [#allocation3], 1
    %1578 = vsyncpa %s1577, 1
    %1579 = vsyncpa [#allocation6], 1
    %1580 = vsyncpa [#allocation9], 1
    %1581 = vsyncpa [#allocation12], 1
    %1582 = vsyncpa [#allocation15], 1
    %1583 = vsyncpa [#allocation18], 1
    %1584 = vsyncpa [#allocation21], 1
    %1585 = vsyncpa [#allocation24], 1
    %1586 = vsyncpa [#allocation4], 1
    %s1587 = scalar_lea.sflag [#allocation4], 1
    %1588 = vsyncpa %s1587, 1

</llo_original>
